<compile_context>
chip_gen: v6e
topology: v6e:2x2x1
jax: 0.10.0
libtpu: 0.0.40
codegen_flags: <defaults>
</compile_context>

<pallas_src>
import math

import jax
import jax.numpy as jnp
from jax.experimental import pallas as pl
from jax.experimental.pallas import tpu as pltpu

# ---- small, module-consistent config (num_heads divides embedding_dim) ----
BATCH = 2
SEQ = 8
EMBED = 32
NUM_HEADS = 4
HEAD_DIM = EMBED // NUM_HEADS
LN_EPS = 1e-5


def _make_mha_kernel(seq_len, num_heads):
    """Single-step kernel over the flattened (B*S, E) token slab."""

    def kernel(x_ref, w_ref, vec_ref, o_ref, ctx_ref):
        rows, emb = x_ref.shape
        n_batches = rows // seq_len
        hd = emb // num_heads
        dd = w_ref.dtype  # MXU operand dtype (f32 default; bf16 on v6e/v7x). Casts are no-ops for f32.

        # ---- unpack packed params (static lane slices of the (2, 4E) slab) ----
        b_qkv = vec_ref[0:1, 0:3 * emb]           # (1, 3E): [bq*scale | bk | bv]
        b_out = vec_ref[0:1, 3 * emb:4 * emb]     # (1, E)
        gamma = vec_ref[1:2, 0:emb]               # (1, E)
        beta = vec_ref[1:2, emb:2 * emb]          # (1, E)

        # ---- LayerNorm over last dim (strictly f32; biased variance, eps inside rsqrt) ----
        x = x_ref[...]                                            # (rows, E) f32
        mean = jnp.mean(x, axis=-1, keepdims=True)
        var = jnp.mean((x - mean) * (x - mean), axis=-1, keepdims=True)
        xn = (x - mean) * jax.lax.rsqrt(var + LN_EPS) * gamma + beta

        # ---- fused q/k/v projection: one lane-dense MXU matmul ----
        w = w_ref[...]                                            # (E, 4E)
        w_qkv_t = w[:, :3 * emb]                                  # (E, 3E); 1/sqrt(hd) folded into q cols
        w_out_t = w[:, 3 * emb:]                                  # (E, E)
        qkv = jnp.dot(xn.astype(dd), w_qkv_t,
                      preferred_element_type=jnp.float32) + b_qkv  # (rows, 3E) f32

        # ---- tiny per-(batch, head) attention; ctx scattered at static lane offsets ----
        for b in range(n_batches):
            lo = b * seq_len                                      # static, sublane-aligned
            for h in range(num_heads):
                c = h * hd                                        # static lane offset
                q = qkv[lo:lo + seq_len, c:c + hd]                # (S, hd), scale already folded
                k = qkv[lo:lo + seq_len, emb + c:emb + c + hd]
                v = qkv[lo:lo + seq_len, 2 * emb + c:2 * emb + c + hd]

                s = jnp.dot(q.astype(dd), k.astype(dd).T,
                            preferred_element_type=jnp.float32)   # (S, S) f32
                s = s - jnp.max(s, axis=-1, keepdims=True)
                p = jnp.exp(s)
                p = p / jnp.sum(p, axis=-1, keepdims=True)        # exact softmax (f32)

                ctx_ref[lo:lo + seq_len, c:c + hd] = jnp.dot(
                    p.astype(dd), v.astype(dd),
                    preferred_element_type=jnp.float32)           # (S, hd) f32

        # ---- output projection: one lane-dense matmul over the full (rows, E) ctx ----
        out = jnp.dot(ctx_ref[...].astype(dd), w_out_t,
                      preferred_element_type=jnp.float32) + b_out
        o_ref[...] = out.astype(o_ref.dtype)

    return kernel


def _prep_params(gamma, beta, w_qkv, b_qkv, w_out, b_out, matmul_dtype):
    """Wrapper-side layout plumbing: pack everything into two lane-dense slabs."""
    E = gamma.shape[0]
    scale = 1.0 / math.sqrt(HEAD_DIM)

    # PyTorch convention y = x @ W.T + b.  Fold 1/sqrt(head_dim) into q (in f32, before cast).
    w_q, w_k, w_v = w_qkv[:E], w_qkv[E:2 * E], w_qkv[2 * E:]
    w_slab = jnp.concatenate(
        [(w_q * scale).T, w_k.T, w_v.T, w_out.T], axis=1).astype(matmul_dtype)   # (E, 4E)

    # (2, 4E) f32 vector slab: row 0 = [bq*scale | bk | bv | bout], row 1 = [gamma | beta | 0 | 0].
    biases = jnp.concatenate([b_qkv[:E] * scale, b_qkv[E:], b_out])               # (4E,)
    affine = jnp.concatenate([gamma, beta, jnp.zeros((2 * E,), jnp.float32)])     # (4E,)
    vec_slab = jnp.stack([biases, affine], axis=0).astype(jnp.float32)            # (2, 4E)

    return w_slab, vec_slab


def multi_head_attention(x, gamma, beta, w_qkv, b_qkv, w_out, b_out, *,
                         matmul_dtype=jnp.float32):
    """x: (B, S, E) float32. Returns (B, S, E).

    Single grid step over the flattened (B*S, E) slab (best on single-TC v5e/v6e and, at this
    problem size, also on v7x).  matmul_dtype=jnp.bfloat16 enables bf16 MXU operands (v6e/v7x).
    """
    B, S, E = x.shape
    rows = B * S

    w_slab, vec_slab = _prep_params(gamma, beta, w_qkv, b_qkv, w_out, b_out, matmul_dtype)
    xf = x.reshape(rows, E)

    out = pl.pallas_call(
        _make_mha_kernel(S, NUM_HEADS),
        out_shape=jax.ShapeDtypeStruct((rows, E), x.dtype),
        grid=(1,),
        in_specs=[pl.BlockSpec((rows, E), lambda i: (0, 0)),
                  pl.BlockSpec(w_slab.shape, lambda i: (0, 0)),
                  pl.BlockSpec(vec_slab.shape, lambda i: (0, 0))],
        out_specs=pl.BlockSpec((rows, E), lambda i: (0, 0)),
        scratch_shapes=[pltpu.VMEM((rows, E), jnp.float32)],     # per-head ctx scatter buffer
        compiler_params=pltpu.CompilerParams(dimension_semantics=("arbitrary",)),
    )(xf, w_slab, vec_slab)

    return out.reshape(B, S, E)


def _reference(x, gamma, beta, w_qkv, b_qkv, w_out, b_out):
    """Pure-JAX reference mirroring PyTorch LayerNorm + nn.MultiheadAttention (batch_first)."""
    mean = jnp.mean(x, axis=-1, keepdims=True)
    var = jnp.mean((x - mean) ** 2, axis=-1, keepdims=True)
    xn = (x - mean) / jnp.sqrt(var + LN_EPS) * gamma + beta

    qkv = jnp.einsum("bse,fe->bsf", xn, w_qkv) + b_qkv          # (B, S, 3E)
    q, k, v = jnp.split(qkv, 3, axis=-1)

    def split_heads(t):
        B, S, E = t.shape
        return t.reshape(B, S, NUM_HEADS, HEAD_DIM).transpose(0, 2, 1, 3)

    qh, kh, vh = split_heads(q), split_heads(k), split_heads(v)
    s = jnp.einsum("bhqd,bhkd->bhqk", qh, kh) / math.sqrt(HEAD_DIM)
    p = jax.nn.softmax(s, axis=-1)
    ctx = jnp.einsum("bhqk,bhkd->bhqd", p, vh)
    ctx = ctx.transpose(0, 2, 1, 3).reshape(x.shape[0], x.shape[1], EMBED)
    return jnp.einsum("bse,fe->bsf", ctx, w_out) + b_out


if __name__ == "__main__":
    key = jax.random.PRNGKey(0)
    k_x, k_wqkv, k_bqkv, k_wout, k_bout, k_g, k_b = jax.random.split(key, 7)

    x = jax.random.normal(k_x, (BATCH, SEQ, EMBED), dtype=jnp.float32)

    # Deterministic parameter init (shapes match nn.LayerNorm + nn.MultiheadAttention).
    gamma = 1.0 + 0.05 * jax.random.normal(k_g, (EMBED,), dtype=jnp.float32)
    beta = 0.05 * jax.random.normal(k_b, (EMBED,), dtype=jnp.float32)
    w_qkv = jax.random.normal(k_wqkv, (3 * EMBED, EMBED), dtype=jnp.float32) / math.sqrt(EMBED)
    b_qkv = 0.02 * jax.random.normal(k_bqkv, (3 * EMBED,), dtype=jnp.float32)
    w_out = jax.random.normal(k_wout, (EMBED, EMBED), dtype=jnp.float32) / math.sqrt(EMBED)
    b_out = 0.02 * jax.random.normal(k_bout, (EMBED,), dtype=jnp.float32)

    ref = _reference(x, gamma, beta, w_qkv, b_qkv, w_out, b_out)

    # Default f32 MXU operands: exact math end to end, tight tolerance.
    out_f32 = jax.block_until_ready(
        multi_head_attention(x, gamma, beta, w_qkv, b_qkv, w_out, b_out))
    assert out_f32.shape == (BATCH, SEQ, EMBED)
    assert jnp.allclose(out_f32, ref, atol=2e-3, rtol=2e-3), "mismatch vs JAX reference (f32)"

    # bf16 MXU operands (v6e/v7x fast path); statistics stay f32 -> loose tolerance only
    # for the bf16 operand rounding.
    out_bf16 = jax.block_until_ready(
        multi_head_attention(x, gamma, beta, w_qkv, b_qkv, w_out, b_out,
                             matmul_dtype=jnp.bfloat16))
    assert jnp.allclose(out_bf16, ref, atol=1e-1, rtol=1e-1), "mismatch vs JAX reference (bf16)"

    print("KERNEL_OK")
</pallas_src>

<mosaic_0001>
module attributes {stable_mosaic.version = 11 : i64} {
  func.func @kernel(%arg0: i32, %arg1: memref<16x32xf32, #tpu.memory_space<vmem>>, %arg2: memref<32x128xf32, #tpu.memory_space<vmem>>, %arg3: memref<2x128xf32, #tpu.memory_space<vmem>>, %arg4: memref<16x32xf32, #tpu.memory_space<vmem>>, %arg5: memref<16x32xf32, #tpu.memory_space<vmem>>) attributes {dimension_semantics = [#tpu.dimension_semantics<arbitrary>], iteration_bounds = array<i64: 1>, scalar_prefetch = 0 : i64, scratch_operands = 1 : i64, tpu.core_type = #tpu.core_type<tc>, window_params = [{pipeline_mode = #tpu.pipeline_mode<synchronous>, transform_indices = @transform_0, window_bounds = array<i64: 16, 32>}, {pipeline_mode = #tpu.pipeline_mode<synchronous>, transform_indices = @transform_1, window_bounds = array<i64: 32, 128>}, {pipeline_mode = #tpu.pipeline_mode<synchronous>, transform_indices = @transform_2, window_bounds = array<i64: 2, 128>}, {pipeline_mode = #tpu.pipeline_mode<synchronous>, transform_indices = @transform_3, window_bounds = array<i64: 16, 32>}]} {
    %c0 = arith.constant 0 : index
    %c0_0 = arith.constant 0 : index
    %0 = vector.load %arg3[%c0, %c0_0] : memref<2x128xf32, #tpu.memory_space<vmem>>, vector<1x96xf32>
    %c0_1 = arith.constant 0 : index
    %c96 = arith.constant 96 : index
    %1 = vector.load %arg3[%c0_1, %c96] : memref<2x128xf32, #tpu.memory_space<vmem>>, vector<1x32xf32>
    %c1 = arith.constant 1 : index
    %c0_2 = arith.constant 0 : index
    %2 = vector.load %arg3[%c1, %c0_2] : memref<2x128xf32, #tpu.memory_space<vmem>>, vector<1x32xf32>
    %c1_3 = arith.constant 1 : index
    %c32 = arith.constant 32 : index
    %3 = vector.load %arg3[%c1_3, %c32] : memref<2x128xf32, #tpu.memory_space<vmem>>, vector<1x32xf32>
    %c0_4 = arith.constant 0 : index
    %c0_5 = arith.constant 0 : index
    %4 = vector.load %arg1[%c0_4, %c0_5] : memref<16x32xf32, #tpu.memory_space<vmem>>, vector<16x32xf32>
    %cst = arith.constant dense<0.000000e+00> : vector<16xf32>
    %5 = vector.multi_reduction <add>, %4, %cst [1] : vector<16x32xf32> to vector<16xf32>
    %6 = vector.shape_cast %5 : vector<16xf32> to vector<16x1xf32>
    %cst_6 = arith.constant 3.200000e+01 : f32
    %7 = vector.broadcast %cst_6 : f32 to vector<16x1xf32>
    %8 = arith.divf %6, %7 : vector<16x1xf32>
    %9 = vector.broadcast %8 : vector<16x1xf32> to vector<16x32xf32>
    %10 = arith.subf %4, %9 : vector<16x32xf32>
    %11 = vector.broadcast %8 : vector<16x1xf32> to vector<16x32xf32>
    %12 = arith.subf %4, %11 : vector<16x32xf32>
    %13 = arith.mulf %10, %12 : vector<16x32xf32>
    %cst_7 = arith.constant dense<0.000000e+00> : vector<16xf32>
    %14 = vector.multi_reduction <add>, %13, %cst_7 [1] : vector<16x32xf32> to vector<16xf32>
    %15 = vector.shape_cast %14 : vector<16xf32> to vector<16x1xf32>
    %cst_8 = arith.constant 3.200000e+01 : f32
    %16 = vector.broadcast %cst_8 : f32 to vector<16x1xf32>
    %17 = arith.divf %15, %16 : vector<16x1xf32>
    %18 = vector.broadcast %8 : vector<16x1xf32> to vector<16x32xf32>
    %19 = arith.subf %4, %18 : vector<16x32xf32>
    %cst_9 = arith.constant 9.99999974E-6 : f32
    %20 = vector.broadcast %cst_9 : f32 to vector<16x1xf32>
    %21 = arith.addf %17, %20 : vector<16x1xf32>
    %22 = math.rsqrt %21 : vector<16x1xf32>
    %23 = vector.broadcast %22 : vector<16x1xf32> to vector<16x32xf32>
    %24 = arith.mulf %19, %23 : vector<16x32xf32>
    %25 = vector.broadcast %2 : vector<1x32xf32> to vector<16x32xf32>
    %26 = arith.mulf %24, %25 : vector<16x32xf32>
    %27 = vector.broadcast %3 : vector<1x32xf32> to vector<16x32xf32>
    %28 = arith.addf %26, %27 : vector<16x32xf32>
    %c0_10 = arith.constant 0 : index
    %c0_11 = arith.constant 0 : index
    %29 = vector.load %arg2[%c0_10, %c0_11] : memref<32x128xf32, #tpu.memory_space<vmem>>, vector<32x128xf32>
    %30 = vector.extract_strided_slice %29 {offsets = [0, 0], sizes = [32, 96], strides = [1, 1]} : vector<32x128xf32> to vector<32x96xf32>
    %31 = vector.extract_strided_slice %29 {offsets = [0, 96], sizes = [32, 32], strides = [1, 1]} : vector<32x128xf32> to vector<32x32xf32>
    %cst_12 = arith.constant dense<0.000000e+00> : vector<16x96xf32>
    %32 = tpu.matmul %28, %30, %cst_12 {dimension_numbers = #tpu.dot_dimension_numbers<[1], [0], [0], [1], [0, 0, 1, 1], [], []>} : vector<16x32xf32>, vector<32x96xf32>, vector<16x96xf32> -> vector<16x96xf32>
    %33 = vector.broadcast %0 : vector<1x96xf32> to vector<16x96xf32>
    %34 = arith.addf %32, %33 : vector<16x96xf32>
    %35 = vector.extract_strided_slice %34 {offsets = [0, 0], sizes = [8, 8], strides = [1, 1]} : vector<16x96xf32> to vector<8x8xf32>
    %36 = vector.extract_strided_slice %34 {offsets = [0, 32], sizes = [8, 8], strides = [1, 1]} : vector<16x96xf32> to vector<8x8xf32>
    %37 = vector.extract_strided_slice %34 {offsets = [0, 64], sizes = [8, 8], strides = [1, 1]} : vector<16x96xf32> to vector<8x8xf32>
    %38 = tpu.transpose %36, [1, 0] : vector<8x8xf32> -> vector<8x8xf32>
    %cst_13 = arith.constant dense<0.000000e+00> : vector<8x8xf32>
    %39 = tpu.matmul %35, %38, %cst_13 {dimension_numbers = #tpu.dot_dimension_numbers<[1], [0], [0], [1], [0, 0, 1, 1], [], []>} : vector<8x8xf32>, vector<8x8xf32>, vector<8x8xf32> -> vector<8x8xf32>
    %cst_14 = arith.constant dense<0xFF800000> : vector<8xf32>
    %40 = vector.multi_reduction <maximumf>, %39, %cst_14 [1] : vector<8x8xf32> to vector<8xf32>
    %41 = vector.shape_cast %40 : vector<8xf32> to vector<8x1xf32>
    %42 = vector.broadcast %41 : vector<8x1xf32> to vector<8x8xf32>
    %43 = arith.subf %39, %42 : vector<8x8xf32>
    %44 = math.exp %43 : vector<8x8xf32>
    %cst_15 = arith.constant dense<0.000000e+00> : vector<8xf32>
    %45 = vector.multi_reduction <add>, %44, %cst_15 [1] : vector<8x8xf32> to vector<8xf32>
    %46 = vector.shape_cast %45 : vector<8xf32> to vector<8x1xf32>
    %47 = vector.broadcast %46 : vector<8x1xf32> to vector<8x8xf32>
    %48 = arith.divf %44, %47 : vector<8x8xf32>
    %cst_16 = arith.constant dense<0.000000e+00> : vector<8x8xf32>
    %49 = tpu.matmul %48, %37, %cst_16 {dimension_numbers = #tpu.dot_dimension_numbers<[1], [0], [0], [1], [0, 0, 1, 1], [], []>} : vector<8x8xf32>, vector<8x8xf32>, vector<8x8xf32> -> vector<8x8xf32>
    %c0_17 = arith.constant 0 : index
    %c0_18 = arith.constant 0 : index
    %50 = vector.load %arg5[%c0_17, %c0_18] : memref<16x32xf32, #tpu.memory_space<vmem>>, vector<8x8xf32>
    tpu.vector_store %arg5[%c0_17, %c0_18], %49 {strides = array<i32>} : memref<16x32xf32, #tpu.memory_space<vmem>>, vector<8x8xf32>,
    %51 = vector.extract_strided_slice %34 {offsets = [0, 8], sizes = [8, 8], strides = [1, 1]} : vector<16x96xf32> to vector<8x8xf32>
    %52 = vector.extract_strided_slice %34 {offsets = [0, 40], sizes = [8, 8], strides = [1, 1]} : vector<16x96xf32> to vector<8x8xf32>
    %53 = vector.extract_strided_slice %34 {offsets = [0, 72], sizes = [8, 8], strides = [1, 1]} : vector<16x96xf32> to vector<8x8xf32>
    %54 = tpu.transpose %52, [1, 0] : vector<8x8xf32> -> vector<8x8xf32>
    %cst_19 = arith.constant dense<0.000000e+00> : vector<8x8xf32>
    %55 = tpu.matmul %51, %54, %cst_19 {dimension_numbers = #tpu.dot_dimension_numbers<[1], [0], [0], [1], [0, 0, 1, 1], [], []>} : vector<8x8xf32>, vector<8x8xf32>, vector<8x8xf32> -> vector<8x8xf32>
    %cst_20 = arith.constant dense<0xFF800000> : vector<8xf32>
    %56 = vector.multi_reduction <maximumf>, %55, %cst_20 [1] : vector<8x8xf32> to vector<8xf32>
    %57 = vector.shape_cast %56 : vector<8xf32> to vector<8x1xf32>
    %58 = vector.broadcast %57 : vector<8x1xf32> to vector<8x8xf32>
    %59 = arith.subf %55, %58 : vector<8x8xf32>
    %60 = math.exp %59 : vector<8x8xf32>
    %cst_21 = arith.constant dense<0.000000e+00> : vector<8xf32>
    %61 = vector.multi_reduction <add>, %60, %cst_21 [1] : vector<8x8xf32> to vector<8xf32>
    %62 = vector.shape_cast %61 : vector<8xf32> to vector<8x1xf32>
    %63 = vector.broadcast %62 : vector<8x1xf32> to vector<8x8xf32>
    %64 = arith.divf %60, %63 : vector<8x8xf32>
    %cst_22 = arith.constant dense<0.000000e+00> : vector<8x8xf32>
    %65 = tpu.matmul %64, %53, %cst_22 {dimension_numbers = #tpu.dot_dimension_numbers<[1], [0], [0], [1], [0, 0, 1, 1], [], []>} : vector<8x8xf32>, vector<8x8xf32>, vector<8x8xf32> -> vector<8x8xf32>
    %c0_23 = arith.constant 0 : index
    %c8 = arith.constant 8 : index
    %66 = vector.load %arg5[%c0_23, %c8] : memref<16x32xf32, #tpu.memory_space<vmem>>, vector<8x8xf32>
    tpu.vector_store %arg5[%c0_23, %c8], %65 {strides = array<i32>} : memref<16x32xf32, #tpu.memory_space<vmem>>, vector<8x8xf32>,
    %67 = vector.extract_strided_slice %34 {offsets = [0, 16], sizes = [8, 8], strides = [1, 1]} : vector<16x96xf32> to vector<8x8xf32>
    %68 = vector.extract_strided_slice %34 {offsets = [0, 48], sizes = [8, 8], strides = [1, 1]} : vector<16x96xf32> to vector<8x8xf32>
    %69 = vector.extract_strided_slice %34 {offsets = [0, 80], sizes = [8, 8], strides = [1, 1]} : vector<16x96xf32> to vector<8x8xf32>
    %70 = tpu.transpose %68, [1, 0] : vector<8x8xf32> -> vector<8x8xf32>
    %cst_24 = arith.constant dense<0.000000e+00> : vector<8x8xf32>
    %71 = tpu.matmul %67, %70, %cst_24 {dimension_numbers = #tpu.dot_dimension_numbers<[1], [0], [0], [1], [0, 0, 1, 1], [], []>} : vector<8x8xf32>, vector<8x8xf32>, vector<8x8xf32> -> vector<8x8xf32>
    %cst_25 = arith.constant dense<0xFF800000> : vector<8xf32>
    %72 = vector.multi_reduction <maximumf>, %71, %cst_25 [1] : vector<8x8xf32> to vector<8xf32>
    %73 = vector.shape_cast %72 : vector<8xf32> to vector<8x1xf32>
    %74 = vector.broadcast %73 : vector<8x1xf32> to vector<8x8xf32>
    %75 = arith.subf %71, %74 : vector<8x8xf32>
    %76 = math.exp %75 : vector<8x8xf32>
    %cst_26 = arith.constant dense<0.000000e+00> : vector<8xf32>
    %77 = vector.multi_reduction <add>, %76, %cst_26 [1] : vector<8x8xf32> to vector<8xf32>
    %78 = vector.shape_cast %77 : vector<8xf32> to vector<8x1xf32>
    %79 = vector.broadcast %78 : vector<8x1xf32> to vector<8x8xf32>
    %80 = arith.divf %76, %79 : vector<8x8xf32>
    %cst_27 = arith.constant dense<0.000000e+00> : vector<8x8xf32>
    %81 = tpu.matmul %80, %69, %cst_27 {dimension_numbers = #tpu.dot_dimension_numbers<[1], [0], [0], [1], [0, 0, 1, 1], [], []>} : vector<8x8xf32>, vector<8x8xf32>, vector<8x8xf32> -> vector<8x8xf32>
    %c0_28 = arith.constant 0 : index
    %c16 = arith.constant 16 : index
    %82 = vector.load %arg5[%c0_28, %c16] : memref<16x32xf32, #tpu.memory_space<vmem>>, vector<8x8xf32>
    tpu.vector_store %arg5[%c0_28, %c16], %81 {strides = array<i32>} : memref<16x32xf32, #tpu.memory_space<vmem>>, vector<8x8xf32>,
    %83 = vector.extract_strided_slice %34 {offsets = [0, 24], sizes = [8, 8], strides = [1, 1]} : vector<16x96xf32> to vector<8x8xf32>
    %84 = vector.extract_strided_slice %34 {offsets = [0, 56], sizes = [8, 8], strides = [1, 1]} : vector<16x96xf32> to vector<8x8xf32>
    %85 = vector.extract_strided_slice %34 {offsets = [0, 88], sizes = [8, 8], strides = [1, 1]} : vector<16x96xf32> to vector<8x8xf32>
    %86 = tpu.transpose %84, [1, 0] : vector<8x8xf32> -> vector<8x8xf32>
    %cst_29 = arith.constant dense<0.000000e+00> : vector<8x8xf32>
    %87 = tpu.matmul %83, %86, %cst_29 {dimension_numbers = #tpu.dot_dimension_numbers<[1], [0], [0], [1], [0, 0, 1, 1], [], []>} : vector<8x8xf32>, vector<8x8xf32>, vector<8x8xf32> -> vector<8x8xf32>
    %cst_30 = arith.constant dense<0xFF800000> : vector<8xf32>
    %88 = vector.multi_reduction <maximumf>, %87, %cst_30 [1] : vector<8x8xf32> to vector<8xf32>
    %89 = vector.shape_cast %88 : vector<8xf32> to vector<8x1xf32>
    %90 = vector.broadcast %89 : vector<8x1xf32> to vector<8x8xf32>
    %91 = arith.subf %87, %90 : vector<8x8xf32>
    %92 = math.exp %91 : vector<8x8xf32>
    %cst_31 = arith.constant dense<0.000000e+00> : vector<8xf32>
    %93 = vector.multi_reduction <add>, %92, %cst_31 [1] : vector<8x8xf32> to vector<8xf32>
    %94 = vector.shape_cast %93 : vector<8xf32> to vector<8x1xf32>
    %95 = vector.broadcast %94 : vector<8x1xf32> to vector<8x8xf32>
    %96 = arith.divf %92, %95 : vector<8x8xf32>
    %cst_32 = arith.constant dense<0.000000e+00> : vector<8x8xf32>
    %97 = tpu.matmul %96, %85, %cst_32 {dimension_numbers = #tpu.dot_dimension_numbers<[1], [0], [0], [1], [0, 0, 1, 1], [], []>} : vector<8x8xf32>, vector<8x8xf32>, vector<8x8xf32> -> vector<8x8xf32>
    %c0_33 = arith.constant 0 : index
    %c24 = arith.constant 24 : index
    %98 = vector.load %arg5[%c0_33, %c24] : memref<16x32xf32, #tpu.memory_space<vmem>>, vector<8x8xf32>
    tpu.vector_store %arg5[%c0_33, %c24], %97 {strides = array<i32>} : memref<16x32xf32, #tpu.memory_space<vmem>>, vector<8x8xf32>,
    %99 = vector.extract_strided_slice %34 {offsets = [8, 0], sizes = [8, 8], strides = [1, 1]} : vector<16x96xf32> to vector<8x8xf32>
    %100 = vector.extract_strided_slice %34 {offsets = [8, 32], sizes = [8, 8], strides = [1, 1]} : vector<16x96xf32> to vector<8x8xf32>
    %101 = vector.extract_strided_slice %34 {offsets = [8, 64], sizes = [8, 8], strides = [1, 1]} : vector<16x96xf32> to vector<8x8xf32>
    %102 = tpu.transpose %100, [1, 0] : vector<8x8xf32> -> vector<8x8xf32>
    %cst_34 = arith.constant dense<0.000000e+00> : vector<8x8xf32>
    %103 = tpu.matmul %99, %102, %cst_34 {dimension_numbers = #tpu.dot_dimension_numbers<[1], [0], [0], [1], [0, 0, 1, 1], [], []>} : vector<8x8xf32>, vector<8x8xf32>, vector<8x8xf32> -> vector<8x8xf32>
    %cst_35 = arith.constant dense<0xFF800000> : vector<8xf32>
    %104 = vector.multi_reduction <maximumf>, %103, %cst_35 [1] : vector<8x8xf32> to vector<8xf32>
    %105 = vector.shape_cast %104 : vector<8xf32> to vector<8x1xf32>
    %106 = vector.broadcast %105 : vector<8x1xf32> to vector<8x8xf32>
    %107 = arith.subf %103, %106 : vector<8x8xf32>
    %108 = math.exp %107 : vector<8x8xf32>
    %cst_36 = arith.constant dense<0.000000e+00> : vector<8xf32>
    %109 = vector.multi_reduction <add>, %108, %cst_36 [1] : vector<8x8xf32> to vector<8xf32>
    %110 = vector.shape_cast %109 : vector<8xf32> to vector<8x1xf32>
    %111 = vector.broadcast %110 : vector<8x1xf32> to vector<8x8xf32>
    %112 = arith.divf %108, %111 : vector<8x8xf32>
    %cst_37 = arith.constant dense<0.000000e+00> : vector<8x8xf32>
    %113 = tpu.matmul %112, %101, %cst_37 {dimension_numbers = #tpu.dot_dimension_numbers<[1], [0], [0], [1], [0, 0, 1, 1], [], []>} : vector<8x8xf32>, vector<8x8xf32>, vector<8x8xf32> -> vector<8x8xf32>
    %c8_38 = arith.constant 8 : index
    %c0_39 = arith.constant 0 : index
    %114 = vector.load %arg5[%c8_38, %c0_39] : memref<16x32xf32, #tpu.memory_space<vmem>>, vector<8x8xf32>
    tpu.vector_store %arg5[%c8_38, %c0_39], %113 {strides = array<i32>} : memref<16x32xf32, #tpu.memory_space<vmem>>, vector<8x8xf32>,
    %115 = vector.extract_strided_slice %34 {offsets = [8, 8], sizes = [8, 8], strides = [1, 1]} : vector<16x96xf32> to vector<8x8xf32>
    %116 = vector.extract_strided_slice %34 {offsets = [8, 40], sizes = [8, 8], strides = [1, 1]} : vector<16x96xf32> to vector<8x8xf32>
    %117 = vector.extract_strided_slice %34 {offsets = [8, 72], sizes = [8, 8], strides = [1, 1]} : vector<16x96xf32> to vector<8x8xf32>
    %118 = tpu.transpose %116, [1, 0] : vector<8x8xf32> -> vector<8x8xf32>
    %cst_40 = arith.constant dense<0.000000e+00> : vector<8x8xf32>
    %119 = tpu.matmul %115, %118, %cst_40 {dimension_numbers = #tpu.dot_dimension_numbers<[1], [0], [0], [1], [0, 0, 1, 1], [], []>} : vector<8x8xf32>, vector<8x8xf32>, vector<8x8xf32> -> vector<8x8xf32>
    %cst_41 = arith.constant dense<0xFF800000> : vector<8xf32>
    %120 = vector.multi_reduction <maximumf>, %119, %cst_41 [1] : vector<8x8xf32> to vector<8xf32>
    %121 = vector.shape_cast %120 : vector<8xf32> to vector<8x1xf32>
    %122 = vector.broadcast %121 : vector<8x1xf32> to vector<8x8xf32>
    %123 = arith.subf %119, %122 : vector<8x8xf32>
    %124 = math.exp %123 : vector<8x8xf32>
    %cst_42 = arith.constant dense<0.000000e+00> : vector<8xf32>
    %125 = vector.multi_reduction <add>, %124, %cst_42 [1] : vector<8x8xf32> to vector<8xf32>
    %126 = vector.shape_cast %125 : vector<8xf32> to vector<8x1xf32>
    %127 = vector.broadcast %126 : vector<8x1xf32> to vector<8x8xf32>
    %128 = arith.divf %124, %127 : vector<8x8xf32>
    %cst_43 = arith.constant dense<0.000000e+00> : vector<8x8xf32>
    %129 = tpu.matmul %128, %117, %cst_43 {dimension_numbers = #tpu.dot_dimension_numbers<[1], [0], [0], [1], [0, 0, 1, 1], [], []>} : vector<8x8xf32>, vector<8x8xf32>, vector<8x8xf32> -> vector<8x8xf32>
    %c8_44 = arith.constant 8 : index
    %c8_45 = arith.constant 8 : index
    %130 = vector.load %arg5[%c8_44, %c8_45] : memref<16x32xf32, #tpu.memory_space<vmem>>, vector<8x8xf32>
    tpu.vector_store %arg5[%c8_44, %c8_45], %129 {strides = array<i32>} : memref<16x32xf32, #tpu.memory_space<vmem>>, vector<8x8xf32>,
    %131 = vector.extract_strided_slice %34 {offsets = [8, 16], sizes = [8, 8], strides = [1, 1]} : vector<16x96xf32> to vector<8x8xf32>
    %132 = vector.extract_strided_slice %34 {offsets = [8, 48], sizes = [8, 8], strides = [1, 1]} : vector<16x96xf32> to vector<8x8xf32>
    %133 = vector.extract_strided_slice %34 {offsets = [8, 80], sizes = [8, 8], strides = [1, 1]} : vector<16x96xf32> to vector<8x8xf32>
    %134 = tpu.transpose %132, [1, 0] : vector<8x8xf32> -> vector<8x8xf32>
    %cst_46 = arith.constant dense<0.000000e+00> : vector<8x8xf32>
    %135 = tpu.matmul %131, %134, %cst_46 {dimension_numbers = #tpu.dot_dimension_numbers<[1], [0], [0], [1], [0, 0, 1, 1], [], []>} : vector<8x8xf32>, vector<8x8xf32>, vector<8x8xf32> -> vector<8x8xf32>
    %cst_47 = arith.constant dense<0xFF800000> : vector<8xf32>
    %136 = vector.multi_reduction <maximumf>, %135, %cst_47 [1] : vector<8x8xf32> to vector<8xf32>
    %137 = vector.shape_cast %136 : vector<8xf32> to vector<8x1xf32>
    %138 = vector.broadcast %137 : vector<8x1xf32> to vector<8x8xf32>
    %139 = arith.subf %135, %138 : vector<8x8xf32>
    %140 = math.exp %139 : vector<8x8xf32>
    %cst_48 = arith.constant dense<0.000000e+00> : vector<8xf32>
    %141 = vector.multi_reduction <add>, %140, %cst_48 [1] : vector<8x8xf32> to vector<8xf32>
    %142 = vector.shape_cast %141 : vector<8xf32> to vector<8x1xf32>
    %143 = vector.broadcast %142 : vector<8x1xf32> to vector<8x8xf32>
    %144 = arith.divf %140, %143 : vector<8x8xf32>
    %cst_49 = arith.constant dense<0.000000e+00> : vector<8x8xf32>
    %145 = tpu.matmul %144, %133, %cst_49 {dimension_numbers = #tpu.dot_dimension_numbers<[1], [0], [0], [1], [0, 0, 1, 1], [], []>} : vector<8x8xf32>, vector<8x8xf32>, vector<8x8xf32> -> vector<8x8xf32>
    %c8_50 = arith.constant 8 : index
    %c16_51 = arith.constant 16 : index
    %146 = vector.load %arg5[%c8_50, %c16_51] : memref<16x32xf32, #tpu.memory_space<vmem>>, vector<8x8xf32>
    tpu.vector_store %arg5[%c8_50, %c16_51], %145 {strides = array<i32>} : memref<16x32xf32, #tpu.memory_space<vmem>>, vector<8x8xf32>,
    %147 = vector.extract_strided_slice %34 {offsets = [8, 24], sizes = [8, 8], strides = [1, 1]} : vector<16x96xf32> to vector<8x8xf32>
    %148 = vector.extract_strided_slice %34 {offsets = [8, 56], sizes = [8, 8], strides = [1, 1]} : vector<16x96xf32> to vector<8x8xf32>
    %149 = vector.extract_strided_slice %34 {offsets = [8, 88], sizes = [8, 8], strides = [1, 1]} : vector<16x96xf32> to vector<8x8xf32>
    %150 = tpu.transpose %148, [1, 0] : vector<8x8xf32> -> vector<8x8xf32>
    %cst_52 = arith.constant dense<0.000000e+00> : vector<8x8xf32>
    %151 = tpu.matmul %147, %150, %cst_52 {dimension_numbers = #tpu.dot_dimension_numbers<[1], [0], [0], [1], [0, 0, 1, 1], [], []>} : vector<8x8xf32>, vector<8x8xf32>, vector<8x8xf32> -> vector<8x8xf32>
    %cst_53 = arith.constant dense<0xFF800000> : vector<8xf32>
    %152 = vector.multi_reduction <maximumf>, %151, %cst_53 [1] : vector<8x8xf32> to vector<8xf32>
    %153 = vector.shape_cast %152 : vector<8xf32> to vector<8x1xf32>
    %154 = vector.broadcast %153 : vector<8x1xf32> to vector<8x8xf32>
    %155 = arith.subf %151, %154 : vector<8x8xf32>
    %156 = math.exp %155 : vector<8x8xf32>
    %cst_54 = arith.constant dense<0.000000e+00> : vector<8xf32>
    %157 = vector.multi_reduction <add>, %156, %cst_54 [1] : vector<8x8xf32> to vector<8xf32>
    %158 = vector.shape_cast %157 : vector<8xf32> to vector<8x1xf32>
    %159 = vector.broadcast %158 : vector<8x1xf32> to vector<8x8xf32>
    %160 = arith.divf %156, %159 : vector<8x8xf32>
    %cst_55 = arith.constant dense<0.000000e+00> : vector<8x8xf32>
    %161 = tpu.matmul %160, %149, %cst_55 {dimension_numbers = #tpu.dot_dimension_numbers<[1], [0], [0], [1], [0, 0, 1, 1], [], []>} : vector<8x8xf32>, vector<8x8xf32>, vector<8x8xf32> -> vector<8x8xf32>
    %c8_56 = arith.constant 8 : index
    %c24_57 = arith.constant 24 : index
    %162 = vector.load %arg5[%c8_56, %c24_57] : memref<16x32xf32, #tpu.memory_space<vmem>>, vector<8x8xf32>
    tpu.vector_store %arg5[%c8_56, %c24_57], %161 {strides = array<i32>} : memref<16x32xf32, #tpu.memory_space<vmem>>, vector<8x8xf32>,
    %c0_58 = arith.constant 0 : index
    %c0_59 = arith.constant 0 : index
    %163 = vector.load %arg5[%c0_58, %c0_59] : memref<16x32xf32, #tpu.memory_space<vmem>>, vector<16x32xf32>
    %cst_60 = arith.constant dense<0.000000e+00> : vector<16x32xf32>
    %164 = tpu.matmul %163, %31, %cst_60 {dimension_numbers = #tpu.dot_dimension_numbers<[1], [0], [0], [1], [0, 0, 1, 1], [], []>} : vector<16x32xf32>, vector<32x32xf32>, vector<16x32xf32> -> vector<16x32xf32>
    %165 = vector.broadcast %1 : vector<1x32xf32> to vector<16x32xf32>
    %166 = arith.addf %164, %165 : vector<16x32xf32>
    %c0_61 = arith.constant 0 : index
    %c0_62 = arith.constant 0 : index
    %167 = vector.load %arg4[%c0_61, %c0_62] : memref<16x32xf32, #tpu.memory_space<vmem>>, vector<16x32xf32>
    tpu.vector_store %arg4[%c0_61, %c0_62], %166 {strides = array<i32>} : memref<16x32xf32, #tpu.memory_space<vmem>>, vector<16x32xf32>,
    return
  }
  func.func @transform_0(%arg0: i32) -> (i32, i32) {
    %c0_i32 = arith.constant 0 : i32
    %c0_i32_0 = arith.constant 0 : i32
    %c0_i32_1 = arith.constant 0 : i32
    return %c0_i32, %c0_i32_0 : i32, i32
  }
  func.func @transform_1(%arg0: i32) -> (i32, i32) {
    %c0_i32 = arith.constant 0 : i32
    %c0_i32_0 = arith.constant 0 : i32
    %c0_i32_1 = arith.constant 0 : i32
    return %c0_i32, %c0_i32_0 : i32, i32
  }
  func.func @transform_2(%arg0: i32) -> (i32, i32) {
    %c0_i32 = arith.constant 0 : i32
    %c0_i32_0 = arith.constant 0 : i32
    %c0_i32_1 = arith.constant 0 : i32
    return %c0_i32, %c0_i32_0 : i32, i32
  }
  func.func @transform_3(%arg0: i32) -> (i32, i32) {
    %c0_i32 = arith.constant 0 : i32
    %c0_i32_0 = arith.constant 0 : i32
    %c0_i32_1 = arith.constant 0 : i32
    return %c0_i32, %c0_i32_0 : i32, i32
  }
}

</mosaic_0001>

<llo_original>
// kernel: tpu_custom_call.1
$region0: #{tpu_custom_call.1}
  #allocation0 [shape = 'u32[]', space=smem, size = 0x4, offset = 0x4, fixed_abs, tag = 'smem constant byte address 0x4 - core index']
  #allocation1 [shape = 'u32[144,128]{1,0:T(1,128)}', space=vmem, size = 0x12000, scoped, tag = 'internal scratch']
  #allocation2 [shape = 'f32[16,32]{1,0:T(8,128)}', space=vmem, size = 0x2000, scoped, tag = 'scratch operand']
  %s0 = inlined_call_operand.hbm [shape: f32[16,32], index: 0, kind: input, shape index: {}]
  %s1 = inlined_call_operand.hbm [shape: f32[32,128], index: 1, kind: input, shape index: {}]
  %s2 = inlined_call_operand.vmem [shape: f32[2,128], index: 2, kind: input, shape index: {}]
  %s3 = inlined_call_operand.hbm [shape: f32[16,32], index: 3, kind: output, shape index: {}]
  %s4 = sld [smem:[#allocation0]]
  $region30: #{tpu_custom_call.1} parent=0
    _
  %s6 = ssub.s32 1, %s4
  %s7 = scalar_select 0, %s6, %s4
  $region1: #{tpu_custom_call.1} parent=0
    #allocation3 [shape = 'u8[8192]{0}', space=vmem, size = 0x2000, scoped, tag = 'input window, operand 0, single buffered']
    #allocation4 [shape = 's32[1]{0}', space=sflag, size = 0x4, scoped, tag = 'scoped memory for tpu_custom_call.1']
    #allocation5 [shape = 's32[1]{0}', space=sflag, size = 0x4, scoped, tag = 'scoped memory for tpu_custom_call.1']
    #allocation6 [shape = 'u8[16384]{0}', space=vmem, size = 0x4000, scoped, tag = 'input window, operand 1, single buffered']
    #allocation7 [shape = 's32[1]{0}', space=sflag, size = 0x4, scoped, tag = 'scoped memory for tpu_custom_call.1']
    #allocation8 [shape = 'u8[8192]{0}', space=vmem, size = 0x2000, scoped, tag = 'output window, operand 0, single buffered']
    %8 = vsyncpa [#allocation4], 0
    %9 = vsyncpa [#allocation7], 0
    %10 = vsyncpa [#allocation5], 0
    // Predicated region
    $region2: #{tpu_custom_call.1} parent=1 // pred_check
      _
    $region3: #{tpu_custom_call.1} parent=1 // pred_check_branch
      %12 = sbr.rel (0) target = $region5
    $region4: #{tpu_custom_call.1} parent=1 // pred_region
      %s14 = ssub.s32 256, 256
      %15 = vsyncadd [#allocation4], %s14
      %s16 = sshll.u32 [#allocation3], 4
      %s17 = int_to_ptr.vmem [resolvable:$true] %s16
      %22 = dma.hbm_to_vmem [thread:$0]  %s0, 256, %s17, [#allocation4], 128, 128, 8
    $region5: #{tpu_custom_call.1} parent=1 // pred_fallthru
      _
    // Predicated region
    $region6: #{tpu_custom_call.1} parent=1 // pred_check
      _
    $region7: #{tpu_custom_call.1} parent=1 // pred_check_branch
      %24 = sbr.rel (0) target = $region9
    $region8: #{tpu_custom_call.1} parent=1 // pred_region
      %s26 = ssub.s32 512, 512
      %27 = vsyncadd [#allocation7], %s26
      %s28 = sshll.u32 [#allocation6], 4
      %s29 = int_to_ptr.vmem [resolvable:$true] %s28
      %34 = dma.hbm_to_vmem [thread:$0]  %s1, 512, %s29, [#allocation7], 128, 128, 8
    $region9: #{tpu_custom_call.1} parent=1 // pred_fallthru
      _
    // Predicated region
    $region10: #{tpu_custom_call.1} parent=1 // pred_check
      _
    $region11: #{tpu_custom_call.1} parent=1 // pred_check_branch
      %36 = sbr.rel (0) target = $region13
    $region12: #{tpu_custom_call.1} parent=1 // pred_region
      _
    $region13: #{tpu_custom_call.1} parent=1 // pred_fallthru
      _
    // Predicated region
    $region14: #{tpu_custom_call.1} parent=1 // pred_check
      _
    $region15: #{tpu_custom_call.1} parent=1 // pred_check_branch
      %38 = sbr.rel (0) target = $region17
    $region16: #{tpu_custom_call.1} parent=1 // pred_region
      %39 = dma.done [#allocation4], 256
    $region17: #{tpu_custom_call.1} parent=1 // pred_fallthru
      _
    // Predicated region
    $region18: #{tpu_custom_call.1} parent=1 // pred_check
      _
    $region19: #{tpu_custom_call.1} parent=1 // pred_check_branch
      %41 = sbr.rel (0) target = $region21
    $region20: #{tpu_custom_call.1} parent=1 // pred_region
      %42 = dma.done [#allocation7], 512
    $region21: #{tpu_custom_call.1} parent=1 // pred_fallthru
      _
    %v43 = vld [vmem:[%s2] sm:$0x1]
    %v44 = vld [vmem:[%s2 + $0x1] sm:$0x1]
    %v45 = vld [vmem:[#allocation3] sm:$0xff]
    %v46 = vld [vmem:[#allocation3 + $0x8] sm:$0xff]
    %vm47 = vcmask 261120
    %v48 = vsel %vm47, %v45, 0.0
    %49 = vadd.xlane.f32.xlu0 %v48
    %v50 = vpop.xlane.xlu0 %49
    %v51 = vsel %vm47, %v46, 0.0
    %52 = vadd.xlane.f32.xlu0 %v51
    %v53 = vpop.xlane.xlu0 %52
    %v54 = vrcp.pop 32.0
    %v55 = vmul.f32 %v50, %v54
    %v56 = vmul.f32 %v53, %v54
    %v57 = vsub.f32 %v45, %v55
    %v58 = vsub.f32 %v46, %v56
    %v59 = vmul.f32 %v57, %v57
    %v60 = vmul.f32 %v58, %v58
    %v61 = vsel %vm47, %v59, 0.0
    %62 = vadd.xlane.f32.xlu0 %v61
    %v63 = vpop.xlane.xlu0 %62
    %v64 = vsel %vm47, %v60, 0.0
    %65 = vadd.xlane.f32.xlu0 %v64
    %v66 = vpop.xlane.xlu0 %65
    %v67 = vmul.f32 %v63, %v54
    %v68 = vmul.f32 %v66, %v54
    %v69 = vadd.f32 %v67, 1e-05
    %v70 = vadd.f32 %v68, 1e-05
    %v71 = vrsqrt.pop %v69
    %v72 = vrsqrt.pop %v70
    %v73 = vmul.f32 %v57, %v71
    %v74 = vmul.f32 %v58, %v72
    %v75 = vlaneseq
    %v76 = vshrl.u32 %v75, 7
    %v77 = vsub.s32 0, %v76
    %v78 = vrot.slane %v44, %v77
    %v79 = vmul.f32 %v73, %v78
    %v80 = vmul.f32 %v74, %v78
    %82 = vrot.lane.b32.xlu0 %v78, 96
    %v83 = vpop.permute.xlu0 %82
    %v85 = vadd.f32 %v79, %v83
    %v86 = vadd.f32 %v80, %v83
    %v87 = vld [vmem:[#allocation6] sm:$0xff]
    %v88 = vld [vmem:[#allocation6 + $0x8] sm:$0xff]
    %v89 = vld [vmem:[#allocation6 + $0x10] sm:$0xff]
    %v90 = vld [vmem:[#allocation6 + $0x18] sm:$0xff]
    %v91 = vlaneseq
    %v92 = vshrl.u32 %v91, 7
    %v93 = vsub.s32 0, %v92
    %v94 = vrot.slane %v43, %v93
    %v96 = vsel %vm47, %v85, 0
    %v99 = vsel %vm47, %v86, 0
    %101 = vmatprep.subr.mxu0 0.0
    %102 = vmatpush1.msra.mxu0 0.0
    %103 = vmatprep.subr.mxu0 0.0
    %104 = vmatpush1.msra.mxu0 0.0
    %105 = vmatprep.subr.mxu0 0.0
    %106 = vmatpush1.msra.mxu0 0.0
    %107 = vmatprep.subr.mxu0 0.0
    %108 = vmatpush1.msra.mxu0 0.0
    %109 = vmatprep.subr.mxu0 0.0
    %110 = vmatpush1.msra.mxu0 0.0
    %111 = vmatprep.subr.mxu0 0.0
    %112 = vmatpush1.msra.mxu0 0.0
    %113 = vmatprep.subr.mxu0 0.0
    %114 = vmatpush1.msra.mxu0 0.0
    %115 = vmatprep.subr.mxu0 0.0
    %116 = vmatpush1.msra.mxu0 0.0
    %117 = vmatprep.subr.mxu0 0.0
    %118 = vmatpush1.msra.mxu0 0.0
    %119 = vmatprep.subr.mxu0 0.0
    %120 = vmatpush1.msra.mxu0 0.0
    %121 = vmatprep.subr.mxu0 0.0
    %122 = vmatpush1.msra.mxu0 0.0
    %123 = vmatprep.subr.mxu0 0.0
    %124 = vmatpush1.msra.mxu0 0.0
    %125 = vmatprep.subr.mxu0 0.0
    %126 = vmatpush1.msra.mxu0 %v90
    %127 = vmatprep.subr.mxu0 0.0
    %128 = vmatpush1.msra.mxu0 %v89
    %129 = vmatprep.subr.mxu0 0.0
    %130 = vmatpush1.msra.mxu0 %v88
    %131 = vmatprep.subr.mxu0 0.0
    %132 = vmatpush1.msra.mxu0 %v87
    %133 = vmatprep.subr.mxu0 0.0
    %134 = vmatpush2.msra.mxu0 0.0
    %135 = vmatprep.subr.mxu0 0.0
    %136 = vmatpush2.msra.mxu0 0.0
    %137 = vmatprep.subr.mxu0 0.0
    %138 = vmatpush2.msra.mxu0 0.0
    %139 = vmatprep.subr.mxu0 0.0
    %140 = vmatpush2.msra.mxu0 0.0
    %141 = vmatprep.subr.mxu0 0.0
    %142 = vmatpush2.msra.mxu0 0.0
    %143 = vmatprep.subr.mxu0 0.0
    %144 = vmatpush2.msra.mxu0 0.0
    %145 = vmatprep.subr.mxu0 0.0
    %146 = vmatpush2.msra.mxu0 0.0
    %147 = vmatprep.subr.mxu0 0.0
    %148 = vmatpush2.msra.mxu0 0.0
    %149 = vmatprep.subr.mxu0 0.0
    %150 = vmatpush2.msra.mxu0 0.0
    %151 = vmatprep.subr.mxu0 0.0
    %152 = vmatpush2.msra.mxu0 0.0
    %153 = vmatprep.subr.mxu0 0.0
    %154 = vmatpush2.msra.mxu0 0.0
    %155 = vmatprep.subr.mxu0 0.0
    %156 = vmatpush2.msra.mxu0 0.0
    %157 = vmatprep.subr.mxu0 0.0
    %158 = vmatpush2.msra.mxu0 0.0
    %159 = vmatprep.subr.mxu0 0.0
    %160 = vmatpush2.msra.mxu0 0.0
    %161 = vmatprep.subr.mxu0 0.0
    %162 = vmatpush2.msra.mxu0 0.0
    %163 = vmatprep.subr.mxu0 0.0
    %164 = vmatpush2.msra.mxu0 0.0
    %165 = vmatprep.mubr.f32.mxu0 0.0
    %166 = vmatmul.mubr.f32.gmra.mxu0 %v96
    %v167 = vpop.f32.mrf.mxu0
    %v168 = vadd.f32 %v94, %v167
    %v169 = vpop.f32.mrf.mxu0
    %170 = vmatprep.mubr.f32.mxu0 0.0
    %171 = vmatmul.mubr.f32.gmra.mxu0 %v99
    %v172 = vpop.f32.mrf.mxu0
    %v173 = vadd.f32 %v94, %v172
    %v174 = vpop.f32.mrf.mxu0
    %175 = vdwg.mxu0
    %177 = vrot.lane.b32.xlu0 %v168, 96
    %v178 = vpop.permute.xlu0 %177
    %vm179 = vcmask 64512
    %v180 = vsel %vm179, %v168, 0
    %v182 = vsel %vm179, %v178, 0
    %184 = vmatprep.subr.mxu0 0.0
    %185 = vmatpush1.xpose.msra.mxu0 0.0
    %186 = vmatprep.subr.mxu0 0.0
    %187 = vmatpush1.xpose.msra.mxu0 0.0
    %188 = vmatprep.subr.mxu0 0.0
    %189 = vmatpush1.xpose.msra.mxu0 0.0
    %190 = vmatprep.subr.mxu0 0.0
    %191 = vmatpush1.xpose.msra.mxu0 0.0
    %192 = vmatprep.subr.mxu0 0.0
    %193 = vmatpush1.xpose.msra.mxu0 0.0
    %194 = vmatprep.subr.mxu0 0.0
    %195 = vmatpush1.xpose.msra.mxu0 0.0
    %196 = vmatprep.subr.mxu0 0.0
    %197 = vmatpush1.xpose.msra.mxu0 0.0
    %198 = vmatprep.subr.mxu0 0.0
    %199 = vmatpush1.xpose.msra.mxu0 0.0
    %200 = vmatprep.subr.mxu0 0.0
    %201 = vmatpush1.xpose.msra.mxu0 0.0
    %202 = vmatprep.subr.mxu0 0.0
    %203 = vmatpush1.xpose.msra.mxu0 0.0
    %204 = vmatprep.subr.mxu0 0.0
    %205 = vmatpush1.xpose.msra.mxu0 0.0
    %206 = vmatprep.subr.mxu0 0.0
    %207 = vmatpush1.xpose.msra.mxu0 0.0
    %208 = vmatprep.subr.mxu0 0.0
    %209 = vmatpush1.xpose.msra.mxu0 0.0
    %210 = vmatprep.subr.mxu0 0.0
    %211 = vmatpush1.xpose.msra.mxu0 0.0
    %212 = vmatprep.subr.mxu0 0.0
    %213 = vmatpush1.xpose.msra.mxu0 0.0
    %214 = vmatprep.subr.mxu0 0.0
    %215 = vmatpush1.xpose.msra.mxu0 %v182
    %216 = vmatprep.subr.mxu0 0.0
    %217 = vmatpush2.xpose.msra.mxu0 0.0
    %218 = vmatprep.subr.mxu0 0.0
    %219 = vmatpush2.xpose.msra.mxu0 0.0
    %220 = vmatprep.subr.mxu0 0.0
    %221 = vmatpush2.xpose.msra.mxu0 0.0
    %222 = vmatprep.subr.mxu0 0.0
    %223 = vmatpush2.xpose.msra.mxu0 0.0
    %224 = vmatprep.subr.mxu0 0.0
    %225 = vmatpush2.xpose.msra.mxu0 0.0
    %226 = vmatprep.subr.mxu0 0.0
    %227 = vmatpush2.xpose.msra.mxu0 0.0
    %228 = vmatprep.subr.mxu0 0.0
    %229 = vmatpush2.xpose.msra.mxu0 0.0
    %230 = vmatprep.subr.mxu0 0.0
    %231 = vmatpush2.xpose.msra.mxu0 0.0
    %232 = vmatprep.subr.mxu0 0.0
    %233 = vmatpush2.xpose.msra.mxu0 0.0
    %234 = vmatprep.subr.mxu0 0.0
    %235 = vmatpush2.xpose.msra.mxu0 0.0
    %236 = vmatprep.subr.mxu0 0.0
    %237 = vmatpush2.xpose.msra.mxu0 0.0
    %238 = vmatprep.subr.mxu0 0.0
    %239 = vmatpush2.xpose.msra.mxu0 0.0
    %240 = vmatprep.subr.mxu0 0.0
    %241 = vmatpush2.xpose.msra.mxu0 0.0
    %242 = vmatprep.subr.mxu0 0.0
    %243 = vmatpush2.xpose.msra.mxu0 0.0
    %244 = vmatprep.subr.mxu0 0.0
    %245 = vmatpush2.xpose.msra.mxu0 0.0
    %246 = vmatprep.subr.mxu0 0.0
    %247 = vmatpush2.xpose.msra.mxu0 0.0
    %248 = vmatprep.mubr.f32.mxu0 0.0
    %249 = vmatmul.mubr.f32.gmra.mxu0 %v180
    %v250 = vpop.f32.mrf.mxu0
    %v251 = vadd.f32 0.0, %v250
    %v252 = vpop.f32.mrf.mxu0
    %253 = vdwg.mxu0
    %v254 = vsel %vm179, %v251, -inf
    %255 = vmax.xlane.f32.xlu0 %v254
    %v256 = vpop.xlane.xlu0 %255
    %v257 = vsub.f32 %v251, %v256
    %v258 = vmul.f32 %v257, 1.442695
    %v259 = vpow.pop %v258
    %v260 = vsel %vm179, %v259, 0.0
    %261 = vadd.xlane.f32.xlu0 %v260
    %v262 = vpop.xlane.xlu0 %261
    %v263 = vrcp.pop %v262
    %v264 = vmul.f32 %v259, %v263
    %265 = vrot.lane.b32.xlu0 %v168, 64
    %v266 = vpop.permute.xlu0 %265
    %v269 = vsel %vm179, %v264, 0
    %271 = vmatprep.subr.mxu0 0.0
    %272 = vmatpush1.msra.mxu0 0.0
    %273 = vmatprep.subr.mxu0 0.0
    %274 = vmatpush1.msra.mxu0 0.0
    %275 = vmatprep.subr.mxu0 0.0
    %276 = vmatpush1.msra.mxu0 0.0
    %277 = vmatprep.subr.mxu0 0.0
    %278 = vmatpush1.msra.mxu0 0.0
    %279 = vmatprep.subr.mxu0 0.0
    %280 = vmatpush1.msra.mxu0 0.0
    %281 = vmatprep.subr.mxu0 0.0
    %282 = vmatpush1.msra.mxu0 0.0
    %283 = vmatprep.subr.mxu0 0.0
    %284 = vmatpush1.msra.mxu0 0.0
    %285 = vmatprep.subr.mxu0 0.0
    %286 = vmatpush1.msra.mxu0 0.0
    %287 = vmatprep.subr.mxu0 0.0
    %288 = vmatpush1.msra.mxu0 0.0
    %289 = vmatprep.subr.mxu0 0.0
    %290 = vmatpush1.msra.mxu0 0.0
    %291 = vmatprep.subr.mxu0 0.0
    %292 = vmatpush1.msra.mxu0 0.0
    %293 = vmatprep.subr.mxu0 0.0
    %294 = vmatpush1.msra.mxu0 0.0
    %295 = vmatprep.subr.mxu0 0.0
    %296 = vmatpush1.msra.mxu0 0.0
    %297 = vmatprep.subr.mxu0 0.0
    %298 = vmatpush1.msra.mxu0 0.0
    %299 = vmatprep.subr.mxu0 0.0
    %300 = vmatpush1.msra.mxu0 0.0
    %301 = vmatprep.subr.mxu0 0.0
    %302 = vmatpush1.msra.mxu0 %v266
    %303 = vmatprep.subr.mxu0 0.0
    %304 = vmatpush2.msra.mxu0 0.0
    %305 = vmatprep.subr.mxu0 0.0
    %306 = vmatpush2.msra.mxu0 0.0
    %307 = vmatprep.subr.mxu0 0.0
    %308 = vmatpush2.msra.mxu0 0.0
    %309 = vmatprep.subr.mxu0 0.0
    %310 = vmatpush2.msra.mxu0 0.0
    %311 = vmatprep.subr.mxu0 0.0
    %312 = vmatpush2.msra.mxu0 0.0
    %313 = vmatprep.subr.mxu0 0.0
    %314 = vmatpush2.msra.mxu0 0.0
    %315 = vmatprep.subr.mxu0 0.0
    %316 = vmatpush2.msra.mxu0 0.0
    %317 = vmatprep.subr.mxu0 0.0
    %318 = vmatpush2.msra.mxu0 0.0
    %319 = vmatprep.subr.mxu0 0.0
    %320 = vmatpush2.msra.mxu0 0.0
    %321 = vmatprep.subr.mxu0 0.0
    %322 = vmatpush2.msra.mxu0 0.0
    %323 = vmatprep.subr.mxu0 0.0
    %324 = vmatpush2.msra.mxu0 0.0
    %325 = vmatprep.subr.mxu0 0.0
    %326 = vmatpush2.msra.mxu0 0.0
    %327 = vmatprep.subr.mxu0 0.0
    %328 = vmatpush2.msra.mxu0 0.0
    %329 = vmatprep.subr.mxu0 0.0
    %330 = vmatpush2.msra.mxu0 0.0
    %331 = vmatprep.subr.mxu0 0.0
    %332 = vmatpush2.msra.mxu0 0.0
    %333 = vmatprep.subr.mxu0 0.0
    %334 = vmatpush2.msra.mxu0 0.0
    %335 = vmatprep.mubr.f32.mxu0 0.0
    %336 = vmatmul.mubr.f32.gmra.mxu0 %v269
    %v337 = vpop.f32.mrf.mxu0
    %v338 = vadd.f32 0.0, %v337
    %v339 = vpop.f32.mrf.mxu0
    %340 = vdwg.mxu0
    %341 = vst.msk [vmem:[#allocation2] sm:$0xff] %vm179, %v338
    %342 = vrot.lane.b32.xlu0 %v168, 120
    %v343 = vpop.permute.xlu0 %342
    %344 = vrot.lane.b32.xlu0 %v168, 88
    %v345 = vpop.permute.xlu0 %344
    %v346 = vsel %vm179, %v343, 0
    %v348 = vsel %vm179, %v345, 0
    %350 = vmatprep.subr.mxu0 0.0
    %351 = vmatpush1.xpose.msra.mxu0 0.0
    %352 = vmatprep.subr.mxu0 0.0
    %353 = vmatpush1.xpose.msra.mxu0 0.0
    %354 = vmatprep.subr.mxu0 0.0
    %355 = vmatpush1.xpose.msra.mxu0 0.0
    %356 = vmatprep.subr.mxu0 0.0
    %357 = vmatpush1.xpose.msra.mxu0 0.0
    %358 = vmatprep.subr.mxu0 0.0
    %359 = vmatpush1.xpose.msra.mxu0 0.0
    %360 = vmatprep.subr.mxu0 0.0
    %361 = vmatpush1.xpose.msra.mxu0 0.0
    %362 = vmatprep.subr.mxu0 0.0
    %363 = vmatpush1.xpose.msra.mxu0 0.0
    %364 = vmatprep.subr.mxu0 0.0
    %365 = vmatpush1.xpose.msra.mxu0 0.0
    %366 = vmatprep.subr.mxu0 0.0
    %367 = vmatpush1.xpose.msra.mxu0 0.0
    %368 = vmatprep.subr.mxu0 0.0
    %369 = vmatpush1.xpose.msra.mxu0 0.0
    %370 = vmatprep.subr.mxu0 0.0
    %371 = vmatpush1.xpose.msra.mxu0 0.0
    %372 = vmatprep.subr.mxu0 0.0
    %373 = vmatpush1.xpose.msra.mxu0 0.0
    %374 = vmatprep.subr.mxu0 0.0
    %375 = vmatpush1.xpose.msra.mxu0 0.0
    %376 = vmatprep.subr.mxu0 0.0
    %377 = vmatpush1.xpose.msra.mxu0 0.0
    %378 = vmatprep.subr.mxu0 0.0
    %379 = vmatpush1.xpose.msra.mxu0 0.0
    %380 = vmatprep.subr.mxu0 0.0
    %381 = vmatpush1.xpose.msra.mxu0 %v348
    %382 = vmatprep.subr.mxu0 0.0
    %383 = vmatpush2.xpose.msra.mxu0 0.0
    %384 = vmatprep.subr.mxu0 0.0
    %385 = vmatpush2.xpose.msra.mxu0 0.0
    %386 = vmatprep.subr.mxu0 0.0
    %387 = vmatpush2.xpose.msra.mxu0 0.0
    %388 = vmatprep.subr.mxu0 0.0
    %389 = vmatpush2.xpose.msra.mxu0 0.0
    %390 = vmatprep.subr.mxu0 0.0
    %391 = vmatpush2.xpose.msra.mxu0 0.0
    %392 = vmatprep.subr.mxu0 0.0
    %393 = vmatpush2.xpose.msra.mxu0 0.0
    %394 = vmatprep.subr.mxu0 0.0
    %395 = vmatpush2.xpose.msra.mxu0 0.0
    %396 = vmatprep.subr.mxu0 0.0
    %397 = vmatpush2.xpose.msra.mxu0 0.0
    %398 = vmatprep.subr.mxu0 0.0
    %399 = vmatpush2.xpose.msra.mxu0 0.0
    %400 = vmatprep.subr.mxu0 0.0
    %401 = vmatpush2.xpose.msra.mxu0 0.0
    %402 = vmatprep.subr.mxu0 0.0
    %403 = vmatpush2.xpose.msra.mxu0 0.0
    %404 = vmatprep.subr.mxu0 0.0
    %405 = vmatpush2.xpose.msra.mxu0 0.0
    %406 = vmatprep.subr.mxu0 0.0
    %407 = vmatpush2.xpose.msra.mxu0 0.0
    %408 = vmatprep.subr.mxu0 0.0
    %409 = vmatpush2.xpose.msra.mxu0 0.0
    %410 = vmatprep.subr.mxu0 0.0
    %411 = vmatpush2.xpose.msra.mxu0 0.0
    %412 = vmatprep.subr.mxu0 0.0
    %413 = vmatpush2.xpose.msra.mxu0 0.0
    %414 = vmatprep.mubr.f32.mxu0 0.0
    %415 = vmatmul.mubr.f32.gmra.mxu0 %v346
    %v416 = vpop.f32.mrf.mxu0
    %v417 = vadd.f32 0.0, %v416
    %v418 = vpop.f32.mrf.mxu0
    %419 = vdwg.mxu0
    %v420 = vsel %vm179, %v417, -inf
    %421 = vmax.xlane.f32.xlu0 %v420
    %v422 = vpop.xlane.xlu0 %421
    %v423 = vsub.f32 %v417, %v422
    %v424 = vmul.f32 %v423, 1.442695
    %v425 = vpow.pop %v424
    %v426 = vsel %vm179, %v425, 0.0
    %427 = vadd.xlane.f32.xlu0 %v426
    %v428 = vpop.xlane.xlu0 %427
    %v429 = vrcp.pop %v428
    %v430 = vmul.f32 %v425, %v429
    %431 = vrot.lane.b32.xlu0 %v168, 56
    %v432 = vpop.permute.xlu0 %431
    %v435 = vsel %vm179, %v430, 0
    %437 = vmatprep.subr.mxu0 0.0
    %438 = vmatpush1.msra.mxu0 0.0
    %439 = vmatprep.subr.mxu0 0.0
    %440 = vmatpush1.msra.mxu0 0.0
    %441 = vmatprep.subr.mxu0 0.0
    %442 = vmatpush1.msra.mxu0 0.0
    %443 = vmatprep.subr.mxu0 0.0
    %444 = vmatpush1.msra.mxu0 0.0
    %445 = vmatprep.subr.mxu0 0.0
    %446 = vmatpush1.msra.mxu0 0.0
    %447 = vmatprep.subr.mxu0 0.0
    %448 = vmatpush1.msra.mxu0 0.0
    %449 = vmatprep.subr.mxu0 0.0
    %450 = vmatpush1.msra.mxu0 0.0
    %451 = vmatprep.subr.mxu0 0.0
    %452 = vmatpush1.msra.mxu0 0.0
    %453 = vmatprep.subr.mxu0 0.0
    %454 = vmatpush1.msra.mxu0 0.0
    %455 = vmatprep.subr.mxu0 0.0
    %456 = vmatpush1.msra.mxu0 0.0
    %457 = vmatprep.subr.mxu0 0.0
    %458 = vmatpush1.msra.mxu0 0.0
    %459 = vmatprep.subr.mxu0 0.0
    %460 = vmatpush1.msra.mxu0 0.0
    %461 = vmatprep.subr.mxu0 0.0
    %462 = vmatpush1.msra.mxu0 0.0
    %463 = vmatprep.subr.mxu0 0.0
    %464 = vmatpush1.msra.mxu0 0.0
    %465 = vmatprep.subr.mxu0 0.0
    %466 = vmatpush1.msra.mxu0 0.0
    %467 = vmatprep.subr.mxu0 0.0
    %468 = vmatpush1.msra.mxu0 %v432
    %469 = vmatprep.subr.mxu0 0.0
    %470 = vmatpush2.msra.mxu0 0.0
    %471 = vmatprep.subr.mxu0 0.0
    %472 = vmatpush2.msra.mxu0 0.0
    %473 = vmatprep.subr.mxu0 0.0
    %474 = vmatpush2.msra.mxu0 0.0
    %475 = vmatprep.subr.mxu0 0.0
    %476 = vmatpush2.msra.mxu0 0.0
    %477 = vmatprep.subr.mxu0 0.0
    %478 = vmatpush2.msra.mxu0 0.0
    %479 = vmatprep.subr.mxu0 0.0
    %480 = vmatpush2.msra.mxu0 0.0
    %481 = vmatprep.subr.mxu0 0.0
    %482 = vmatpush2.msra.mxu0 0.0
    %483 = vmatprep.subr.mxu0 0.0
    %484 = vmatpush2.msra.mxu0 0.0
    %485 = vmatprep.subr.mxu0 0.0
    %486 = vmatpush2.msra.mxu0 0.0
    %487 = vmatprep.subr.mxu0 0.0
    %488 = vmatpush2.msra.mxu0 0.0
    %489 = vmatprep.subr.mxu0 0.0
    %490 = vmatpush2.msra.mxu0 0.0
    %491 = vmatprep.subr.mxu0 0.0
    %492 = vmatpush2.msra.mxu0 0.0
    %493 = vmatprep.subr.mxu0 0.0
    %494 = vmatpush2.msra.mxu0 0.0
    %495 = vmatprep.subr.mxu0 0.0
    %496 = vmatpush2.msra.mxu0 0.0
    %497 = vmatprep.subr.mxu0 0.0
    %498 = vmatpush2.msra.mxu0 0.0
    %499 = vmatprep.subr.mxu0 0.0
    %500 = vmatpush2.msra.mxu0 0.0
    %501 = vmatprep.mubr.f32.mxu0 0.0
    %502 = vmatmul.mubr.f32.gmra.mxu0 %v435
    %v503 = vpop.f32.mrf.mxu0
    %v504 = vadd.f32 0.0, %v503
    %v505 = vpop.f32.mrf.mxu0
    %506 = vdwg.mxu0
    %508 = vrot.lane.b32.xlu0 %v504, 8
    %v509 = vpop.permute.xlu0 %508
    %vm511 = vcmask 130112
    %512 = vst.msk [vmem:[#allocation2] sm:$0xff] %vm511, %v509
    %513 = vrot.lane.b32.xlu0 %v168, 112
    %v514 = vpop.permute.xlu0 %513
    %515 = vrot.lane.b32.xlu0 %v168, 80
    %v516 = vpop.permute.xlu0 %515
    %v517 = vsel %vm179, %v514, 0
    %v519 = vsel %vm179, %v516, 0
    %521 = vmatprep.subr.mxu0 0.0
    %522 = vmatpush1.xpose.msra.mxu0 0.0
    %523 = vmatprep.subr.mxu0 0.0
    %524 = vmatpush1.xpose.msra.mxu0 0.0
    %525 = vmatprep.subr.mxu0 0.0
    %526 = vmatpush1.xpose.msra.mxu0 0.0
    %527 = vmatprep.subr.mxu0 0.0
    %528 = vmatpush1.xpose.msra.mxu0 0.0
    %529 = vmatprep.subr.mxu0 0.0
    %530 = vmatpush1.xpose.msra.mxu0 0.0
    %531 = vmatprep.subr.mxu0 0.0
    %532 = vmatpush1.xpose.msra.mxu0 0.0
    %533 = vmatprep.subr.mxu0 0.0
    %534 = vmatpush1.xpose.msra.mxu0 0.0
    %535 = vmatprep.subr.mxu0 0.0
    %536 = vmatpush1.xpose.msra.mxu0 0.0
    %537 = vmatprep.subr.mxu0 0.0
    %538 = vmatpush1.xpose.msra.mxu0 0.0
    %539 = vmatprep.subr.mxu0 0.0
    %540 = vmatpush1.xpose.msra.mxu0 0.0
    %541 = vmatprep.subr.mxu0 0.0
    %542 = vmatpush1.xpose.msra.mxu0 0.0
    %543 = vmatprep.subr.mxu0 0.0
    %544 = vmatpush1.xpose.msra.mxu0 0.0
    %545 = vmatprep.subr.mxu0 0.0
    %546 = vmatpush1.xpose.msra.mxu0 0.0
    %547 = vmatprep.subr.mxu0 0.0
    %548 = vmatpush1.xpose.msra.mxu0 0.0
    %549 = vmatprep.subr.mxu0 0.0
    %550 = vmatpush1.xpose.msra.mxu0 0.0
    %551 = vmatprep.subr.mxu0 0.0
    %552 = vmatpush1.xpose.msra.mxu0 %v519
    %553 = vmatprep.subr.mxu0 0.0
    %554 = vmatpush2.xpose.msra.mxu0 0.0
    %555 = vmatprep.subr.mxu0 0.0
    %556 = vmatpush2.xpose.msra.mxu0 0.0
    %557 = vmatprep.subr.mxu0 0.0
    %558 = vmatpush2.xpose.msra.mxu0 0.0
    %559 = vmatprep.subr.mxu0 0.0
    %560 = vmatpush2.xpose.msra.mxu0 0.0
    %561 = vmatprep.subr.mxu0 0.0
    %562 = vmatpush2.xpose.msra.mxu0 0.0
    %563 = vmatprep.subr.mxu0 0.0
    %564 = vmatpush2.xpose.msra.mxu0 0.0
    %565 = vmatprep.subr.mxu0 0.0
    %566 = vmatpush2.xpose.msra.mxu0 0.0
    %567 = vmatprep.subr.mxu0 0.0
    %568 = vmatpush2.xpose.msra.mxu0 0.0
    %569 = vmatprep.subr.mxu0 0.0
    %570 = vmatpush2.xpose.msra.mxu0 0.0
    %571 = vmatprep.subr.mxu0 0.0
    %572 = vmatpush2.xpose.msra.mxu0 0.0
    %573 = vmatprep.subr.mxu0 0.0
    %574 = vmatpush2.xpose.msra.mxu0 0.0
    %575 = vmatprep.subr.mxu0 0.0
    %576 = vmatpush2.xpose.msra.mxu0 0.0
    %577 = vmatprep.subr.mxu0 0.0
    %578 = vmatpush2.xpose.msra.mxu0 0.0
    %579 = vmatprep.subr.mxu0 0.0
    %580 = vmatpush2.xpose.msra.mxu0 0.0
    %581 = vmatprep.subr.mxu0 0.0
    %582 = vmatpush2.xpose.msra.mxu0 0.0
    %583 = vmatprep.subr.mxu0 0.0
    %584 = vmatpush2.xpose.msra.mxu0 0.0
    %585 = vmatprep.mubr.f32.mxu0 0.0
    %586 = vmatmul.mubr.f32.gmra.mxu0 %v517
    %v587 = vpop.f32.mrf.mxu0
    %v588 = vadd.f32 0.0, %v587
    %v589 = vpop.f32.mrf.mxu0
    %590 = vdwg.mxu0
    %v591 = vsel %vm179, %v588, -inf
    %592 = vmax.xlane.f32.xlu0 %v591
    %v593 = vpop.xlane.xlu0 %592
    %v594 = vsub.f32 %v588, %v593
    %v595 = vmul.f32 %v594, 1.442695
    %v596 = vpow.pop %v595
    %v597 = vsel %vm179, %v596, 0.0
    %598 = vadd.xlane.f32.xlu0 %v597
    %v599 = vpop.xlane.xlu0 %598
    %v600 = vrcp.pop %v599
    %v601 = vmul.f32 %v596, %v600
    %602 = vrot.lane.b32.xlu0 %v168, 48
    %v603 = vpop.permute.xlu0 %602
    %v606 = vsel %vm179, %v601, 0
    %608 = vmatprep.subr.mxu0 0.0
    %609 = vmatpush1.msra.mxu0 0.0
    %610 = vmatprep.subr.mxu0 0.0
    %611 = vmatpush1.msra.mxu0 0.0
    %612 = vmatprep.subr.mxu0 0.0
    %613 = vmatpush1.msra.mxu0 0.0
    %614 = vmatprep.subr.mxu0 0.0
    %615 = vmatpush1.msra.mxu0 0.0
    %616 = vmatprep.subr.mxu0 0.0
    %617 = vmatpush1.msra.mxu0 0.0
    %618 = vmatprep.subr.mxu0 0.0
    %619 = vmatpush1.msra.mxu0 0.0
    %620 = vmatprep.subr.mxu0 0.0
    %621 = vmatpush1.msra.mxu0 0.0
    %622 = vmatprep.subr.mxu0 0.0
    %623 = vmatpush1.msra.mxu0 0.0
    %624 = vmatprep.subr.mxu0 0.0
    %625 = vmatpush1.msra.mxu0 0.0
    %626 = vmatprep.subr.mxu0 0.0
    %627 = vmatpush1.msra.mxu0 0.0
    %628 = vmatprep.subr.mxu0 0.0
    %629 = vmatpush1.msra.mxu0 0.0
    %630 = vmatprep.subr.mxu0 0.0
    %631 = vmatpush1.msra.mxu0 0.0
    %632 = vmatprep.subr.mxu0 0.0
    %633 = vmatpush1.msra.mxu0 0.0
    %634 = vmatprep.subr.mxu0 0.0
    %635 = vmatpush1.msra.mxu0 0.0
    %636 = vmatprep.subr.mxu0 0.0
    %637 = vmatpush1.msra.mxu0 0.0
    %638 = vmatprep.subr.mxu0 0.0
    %639 = vmatpush1.msra.mxu0 %v603
    %640 = vmatprep.subr.mxu0 0.0
    %641 = vmatpush2.msra.mxu0 0.0
    %642 = vmatprep.subr.mxu0 0.0
    %643 = vmatpush2.msra.mxu0 0.0
    %644 = vmatprep.subr.mxu0 0.0
    %645 = vmatpush2.msra.mxu0 0.0
    %646 = vmatprep.subr.mxu0 0.0
    %647 = vmatpush2.msra.mxu0 0.0
    %648 = vmatprep.subr.mxu0 0.0
    %649 = vmatpush2.msra.mxu0 0.0
    %650 = vmatprep.subr.mxu0 0.0
    %651 = vmatpush2.msra.mxu0 0.0
    %652 = vmatprep.subr.mxu0 0.0
    %653 = vmatpush2.msra.mxu0 0.0
    %654 = vmatprep.subr.mxu0 0.0
    %655 = vmatpush2.msra.mxu0 0.0
    %656 = vmatprep.subr.mxu0 0.0
    %657 = vmatpush2.msra.mxu0 0.0
    %658 = vmatprep.subr.mxu0 0.0
    %659 = vmatpush2.msra.mxu0 0.0
    %660 = vmatprep.subr.mxu0 0.0
    %661 = vmatpush2.msra.mxu0 0.0
    %662 = vmatprep.subr.mxu0 0.0
    %663 = vmatpush2.msra.mxu0 0.0
    %664 = vmatprep.subr.mxu0 0.0
    %665 = vmatpush2.msra.mxu0 0.0
    %666 = vmatprep.subr.mxu0 0.0
    %667 = vmatpush2.msra.mxu0 0.0
    %668 = vmatprep.subr.mxu0 0.0
    %669 = vmatpush2.msra.mxu0 0.0
    %670 = vmatprep.subr.mxu0 0.0
    %671 = vmatpush2.msra.mxu0 0.0
    %672 = vmatprep.mubr.f32.mxu0 0.0
    %673 = vmatmul.mubr.f32.gmra.mxu0 %v606
    %v674 = vpop.f32.mrf.mxu0
    %v675 = vadd.f32 0.0, %v674
    %v676 = vpop.f32.mrf.mxu0
    %677 = vdwg.mxu0
    %679 = vrot.lane.b32.xlu0 %v675, 16
    %v680 = vpop.permute.xlu0 %679
    %vm682 = vcmask 195712
    %683 = vst.msk [vmem:[#allocation2] sm:$0xff] %vm682, %v680
    %684 = vrot.lane.b32.xlu0 %v168, 104
    %v685 = vpop.permute.xlu0 %684
    %686 = vrot.lane.b32.xlu0 %v168, 72
    %v687 = vpop.permute.xlu0 %686
    %v688 = vsel %vm179, %v685, 0
    %v690 = vsel %vm179, %v687, 0
    %692 = vmatprep.subr.mxu0 0.0
    %693 = vmatpush1.xpose.msra.mxu0 0.0
    %694 = vmatprep.subr.mxu0 0.0
    %695 = vmatpush1.xpose.msra.mxu0 0.0
    %696 = vmatprep.subr.mxu0 0.0
    %697 = vmatpush1.xpose.msra.mxu0 0.0
    %698 = vmatprep.subr.mxu0 0.0
    %699 = vmatpush1.xpose.msra.mxu0 0.0
    %700 = vmatprep.subr.mxu0 0.0
    %701 = vmatpush1.xpose.msra.mxu0 0.0
    %702 = vmatprep.subr.mxu0 0.0
    %703 = vmatpush1.xpose.msra.mxu0 0.0
    %704 = vmatprep.subr.mxu0 0.0
    %705 = vmatpush1.xpose.msra.mxu0 0.0
    %706 = vmatprep.subr.mxu0 0.0
    %707 = vmatpush1.xpose.msra.mxu0 0.0
    %708 = vmatprep.subr.mxu0 0.0
    %709 = vmatpush1.xpose.msra.mxu0 0.0
    %710 = vmatprep.subr.mxu0 0.0
    %711 = vmatpush1.xpose.msra.mxu0 0.0
    %712 = vmatprep.subr.mxu0 0.0
    %713 = vmatpush1.xpose.msra.mxu0 0.0
    %714 = vmatprep.subr.mxu0 0.0
    %715 = vmatpush1.xpose.msra.mxu0 0.0
    %716 = vmatprep.subr.mxu0 0.0
    %717 = vmatpush1.xpose.msra.mxu0 0.0
    %718 = vmatprep.subr.mxu0 0.0
    %719 = vmatpush1.xpose.msra.mxu0 0.0
    %720 = vmatprep.subr.mxu0 0.0
    %721 = vmatpush1.xpose.msra.mxu0 0.0
    %722 = vmatprep.subr.mxu0 0.0
    %723 = vmatpush1.xpose.msra.mxu0 %v690
    %724 = vmatprep.subr.mxu0 0.0
    %725 = vmatpush2.xpose.msra.mxu0 0.0
    %726 = vmatprep.subr.mxu0 0.0
    %727 = vmatpush2.xpose.msra.mxu0 0.0
    %728 = vmatprep.subr.mxu0 0.0
    %729 = vmatpush2.xpose.msra.mxu0 0.0
    %730 = vmatprep.subr.mxu0 0.0
    %731 = vmatpush2.xpose.msra.mxu0 0.0
    %732 = vmatprep.subr.mxu0 0.0
    %733 = vmatpush2.xpose.msra.mxu0 0.0
    %734 = vmatprep.subr.mxu0 0.0
    %735 = vmatpush2.xpose.msra.mxu0 0.0
    %736 = vmatprep.subr.mxu0 0.0
    %737 = vmatpush2.xpose.msra.mxu0 0.0
    %738 = vmatprep.subr.mxu0 0.0
    %739 = vmatpush2.xpose.msra.mxu0 0.0
    %740 = vmatprep.subr.mxu0 0.0
    %741 = vmatpush2.xpose.msra.mxu0 0.0
    %742 = vmatprep.subr.mxu0 0.0
    %743 = vmatpush2.xpose.msra.mxu0 0.0
    %744 = vmatprep.subr.mxu0 0.0
    %745 = vmatpush2.xpose.msra.mxu0 0.0
    %746 = vmatprep.subr.mxu0 0.0
    %747 = vmatpush2.xpose.msra.mxu0 0.0
    %748 = vmatprep.subr.mxu0 0.0
    %749 = vmatpush2.xpose.msra.mxu0 0.0
    %750 = vmatprep.subr.mxu0 0.0
    %751 = vmatpush2.xpose.msra.mxu0 0.0
    %752 = vmatprep.subr.mxu0 0.0
    %753 = vmatpush2.xpose.msra.mxu0 0.0
    %754 = vmatprep.subr.mxu0 0.0
    %755 = vmatpush2.xpose.msra.mxu0 0.0
    %756 = vmatprep.mubr.f32.mxu0 0.0
    %757 = vmatmul.mubr.f32.gmra.mxu0 %v688
    %v758 = vpop.f32.mrf.mxu0
    %v759 = vadd.f32 0.0, %v758
    %v760 = vpop.f32.mrf.mxu0
    %761 = vdwg.mxu0
    %v762 = vsel %vm179, %v759, -inf
    %763 = vmax.xlane.f32.xlu0 %v762
    %v764 = vpop.xlane.xlu0 %763
    %v765 = vsub.f32 %v759, %v764
    %v766 = vmul.f32 %v765, 1.442695
    %v767 = vpow.pop %v766
    %v768 = vsel %vm179, %v767, 0.0
    %769 = vadd.xlane.f32.xlu0 %v768
    %v770 = vpop.xlane.xlu0 %769
    %v771 = vrcp.pop %v770
    %v772 = vmul.f32 %v767, %v771
    %773 = vrot.lane.b32.xlu0 %v168, 40
    %v774 = vpop.permute.xlu0 %773
    %v777 = vsel %vm179, %v772, 0
    %779 = vmatprep.subr.mxu0 0.0
    %780 = vmatpush1.msra.mxu0 0.0
    %781 = vmatprep.subr.mxu0 0.0
    %782 = vmatpush1.msra.mxu0 0.0
    %783 = vmatprep.subr.mxu0 0.0
    %784 = vmatpush1.msra.mxu0 0.0
    %785 = vmatprep.subr.mxu0 0.0
    %786 = vmatpush1.msra.mxu0 0.0
    %787 = vmatprep.subr.mxu0 0.0
    %788 = vmatpush1.msra.mxu0 0.0
    %789 = vmatprep.subr.mxu0 0.0
    %790 = vmatpush1.msra.mxu0 0.0
    %791 = vmatprep.subr.mxu0 0.0
    %792 = vmatpush1.msra.mxu0 0.0
    %793 = vmatprep.subr.mxu0 0.0
    %794 = vmatpush1.msra.mxu0 0.0
    %795 = vmatprep.subr.mxu0 0.0
    %796 = vmatpush1.msra.mxu0 0.0
    %797 = vmatprep.subr.mxu0 0.0
    %798 = vmatpush1.msra.mxu0 0.0
    %799 = vmatprep.subr.mxu0 0.0
    %800 = vmatpush1.msra.mxu0 0.0
    %801 = vmatprep.subr.mxu0 0.0
    %802 = vmatpush1.msra.mxu0 0.0
    %803 = vmatprep.subr.mxu0 0.0
    %804 = vmatpush1.msra.mxu0 0.0
    %805 = vmatprep.subr.mxu0 0.0
    %806 = vmatpush1.msra.mxu0 0.0
    %807 = vmatprep.subr.mxu0 0.0
    %808 = vmatpush1.msra.mxu0 0.0
    %809 = vmatprep.subr.mxu0 0.0
    %810 = vmatpush1.msra.mxu0 %v774
    %811 = vmatprep.subr.mxu0 0.0
    %812 = vmatpush2.msra.mxu0 0.0
    %813 = vmatprep.subr.mxu0 0.0
    %814 = vmatpush2.msra.mxu0 0.0
    %815 = vmatprep.subr.mxu0 0.0
    %816 = vmatpush2.msra.mxu0 0.0
    %817 = vmatprep.subr.mxu0 0.0
    %818 = vmatpush2.msra.mxu0 0.0
    %819 = vmatprep.subr.mxu0 0.0
    %820 = vmatpush2.msra.mxu0 0.0
    %821 = vmatprep.subr.mxu0 0.0
    %822 = vmatpush2.msra.mxu0 0.0
    %823 = vmatprep.subr.mxu0 0.0
    %824 = vmatpush2.msra.mxu0 0.0
    %825 = vmatprep.subr.mxu0 0.0
    %826 = vmatpush2.msra.mxu0 0.0
    %827 = vmatprep.subr.mxu0 0.0
    %828 = vmatpush2.msra.mxu0 0.0
    %829 = vmatprep.subr.mxu0 0.0
    %830 = vmatpush2.msra.mxu0 0.0
    %831 = vmatprep.subr.mxu0 0.0
    %832 = vmatpush2.msra.mxu0 0.0
    %833 = vmatprep.subr.mxu0 0.0
    %834 = vmatpush2.msra.mxu0 0.0
    %835 = vmatprep.subr.mxu0 0.0
    %836 = vmatpush2.msra.mxu0 0.0
    %837 = vmatprep.subr.mxu0 0.0
    %838 = vmatpush2.msra.mxu0 0.0
    %839 = vmatprep.subr.mxu0 0.0
    %840 = vmatpush2.msra.mxu0 0.0
    %841 = vmatprep.subr.mxu0 0.0
    %842 = vmatpush2.msra.mxu0 0.0
    %843 = vmatprep.mubr.f32.mxu0 0.0
    %844 = vmatmul.mubr.f32.gmra.mxu0 %v777
    %v845 = vpop.f32.mrf.mxu0
    %v846 = vadd.f32 0.0, %v845
    %v847 = vpop.f32.mrf.mxu0
    %848 = vdwg.mxu0
    %850 = vrot.lane.b32.xlu0 %v846, 24
    %v851 = vpop.permute.xlu0 %850
    %vm853 = vcmask 261312
    %854 = vst.msk [vmem:[#allocation2] sm:$0xff] %vm853, %v851
    %856 = vrot.lane.b32.xlu0 %v173, 96
    %v857 = vpop.permute.xlu0 %856
    %v858 = vsel %vm179, %v173, 0
    %v860 = vsel %vm179, %v857, 0
    %862 = vmatprep.subr.mxu0 0.0
    %863 = vmatpush1.xpose.msra.mxu0 0.0
    %864 = vmatprep.subr.mxu0 0.0
    %865 = vmatpush1.xpose.msra.mxu0 0.0
    %866 = vmatprep.subr.mxu0 0.0
    %867 = vmatpush1.xpose.msra.mxu0 0.0
    %868 = vmatprep.subr.mxu0 0.0
    %869 = vmatpush1.xpose.msra.mxu0 0.0
    %870 = vmatprep.subr.mxu0 0.0
    %871 = vmatpush1.xpose.msra.mxu0 0.0
    %872 = vmatprep.subr.mxu0 0.0
    %873 = vmatpush1.xpose.msra.mxu0 0.0
    %874 = vmatprep.subr.mxu0 0.0
    %875 = vmatpush1.xpose.msra.mxu0 0.0
    %876 = vmatprep.subr.mxu0 0.0
    %877 = vmatpush1.xpose.msra.mxu0 0.0
    %878 = vmatprep.subr.mxu0 0.0
    %879 = vmatpush1.xpose.msra.mxu0 0.0
    %880 = vmatprep.subr.mxu0 0.0
    %881 = vmatpush1.xpose.msra.mxu0 0.0
    %882 = vmatprep.subr.mxu0 0.0
    %883 = vmatpush1.xpose.msra.mxu0 0.0
    %884 = vmatprep.subr.mxu0 0.0
    %885 = vmatpush1.xpose.msra.mxu0 0.0
    %886 = vmatprep.subr.mxu0 0.0
    %887 = vmatpush1.xpose.msra.mxu0 0.0
    %888 = vmatprep.subr.mxu0 0.0
    %889 = vmatpush1.xpose.msra.mxu0 0.0
    %890 = vmatprep.subr.mxu0 0.0
    %891 = vmatpush1.xpose.msra.mxu0 0.0
    %892 = vmatprep.subr.mxu0 0.0
    %893 = vmatpush1.xpose.msra.mxu0 %v860
    %894 = vmatprep.subr.mxu0 0.0
    %895 = vmatpush2.xpose.msra.mxu0 0.0
    %896 = vmatprep.subr.mxu0 0.0
    %897 = vmatpush2.xpose.msra.mxu0 0.0
    %898 = vmatprep.subr.mxu0 0.0
    %899 = vmatpush2.xpose.msra.mxu0 0.0
    %900 = vmatprep.subr.mxu0 0.0
    %901 = vmatpush2.xpose.msra.mxu0 0.0
    %902 = vmatprep.subr.mxu0 0.0
    %903 = vmatpush2.xpose.msra.mxu0 0.0
    %904 = vmatprep.subr.mxu0 0.0
    %905 = vmatpush2.xpose.msra.mxu0 0.0
    %906 = vmatprep.subr.mxu0 0.0
    %907 = vmatpush2.xpose.msra.mxu0 0.0
    %908 = vmatprep.subr.mxu0 0.0
    %909 = vmatpush2.xpose.msra.mxu0 0.0
    %910 = vmatprep.subr.mxu0 0.0
    %911 = vmatpush2.xpose.msra.mxu0 0.0
    %912 = vmatprep.subr.mxu0 0.0
    %913 = vmatpush2.xpose.msra.mxu0 0.0
    %914 = vmatprep.subr.mxu0 0.0
    %915 = vmatpush2.xpose.msra.mxu0 0.0
    %916 = vmatprep.subr.mxu0 0.0
    %917 = vmatpush2.xpose.msra.mxu0 0.0
    %918 = vmatprep.subr.mxu0 0.0
    %919 = vmatpush2.xpose.msra.mxu0 0.0
    %920 = vmatprep.subr.mxu0 0.0
    %921 = vmatpush2.xpose.msra.mxu0 0.0
    %922 = vmatprep.subr.mxu0 0.0
    %923 = vmatpush2.xpose.msra.mxu0 0.0
    %924 = vmatprep.subr.mxu0 0.0
    %925 = vmatpush2.xpose.msra.mxu0 0.0
    %926 = vmatprep.mubr.f32.mxu0 0.0
    %927 = vmatmul.mubr.f32.gmra.mxu0 %v858
    %v928 = vpop.f32.mrf.mxu0
    %v929 = vadd.f32 0.0, %v928
    %v930 = vpop.f32.mrf.mxu0
    %931 = vdwg.mxu0
    %v932 = vsel %vm179, %v929, -inf
    %933 = vmax.xlane.f32.xlu0 %v932
    %v934 = vpop.xlane.xlu0 %933
    %v935 = vsub.f32 %v929, %v934
    %v936 = vmul.f32 %v935, 1.442695
    %v937 = vpow.pop %v936
    %v938 = vsel %vm179, %v937, 0.0
    %939 = vadd.xlane.f32.xlu0 %v938
    %v940 = vpop.xlane.xlu0 %939
    %v941 = vrcp.pop %v940
    %v942 = vmul.f32 %v937, %v941
    %943 = vrot.lane.b32.xlu0 %v173, 64
    %v944 = vpop.permute.xlu0 %943
    %v947 = vsel %vm179, %v942, 0
    %949 = vmatprep.subr.mxu0 0.0
    %950 = vmatpush1.msra.mxu0 0.0
    %951 = vmatprep.subr.mxu0 0.0
    %952 = vmatpush1.msra.mxu0 0.0
    %953 = vmatprep.subr.mxu0 0.0
    %954 = vmatpush1.msra.mxu0 0.0
    %955 = vmatprep.subr.mxu0 0.0
    %956 = vmatpush1.msra.mxu0 0.0
    %957 = vmatprep.subr.mxu0 0.0
    %958 = vmatpush1.msra.mxu0 0.0
    %959 = vmatprep.subr.mxu0 0.0
    %960 = vmatpush1.msra.mxu0 0.0
    %961 = vmatprep.subr.mxu0 0.0
    %962 = vmatpush1.msra.mxu0 0.0
    %963 = vmatprep.subr.mxu0 0.0
    %964 = vmatpush1.msra.mxu0 0.0
    %965 = vmatprep.subr.mxu0 0.0
    %966 = vmatpush1.msra.mxu0 0.0
    %967 = vmatprep.subr.mxu0 0.0
    %968 = vmatpush1.msra.mxu0 0.0
    %969 = vmatprep.subr.mxu0 0.0
    %970 = vmatpush1.msra.mxu0 0.0
    %971 = vmatprep.subr.mxu0 0.0
    %972 = vmatpush1.msra.mxu0 0.0
    %973 = vmatprep.subr.mxu0 0.0
    %974 = vmatpush1.msra.mxu0 0.0
    %975 = vmatprep.subr.mxu0 0.0
    %976 = vmatpush1.msra.mxu0 0.0
    %977 = vmatprep.subr.mxu0 0.0
    %978 = vmatpush1.msra.mxu0 0.0
    %979 = vmatprep.subr.mxu0 0.0
    %980 = vmatpush1.msra.mxu0 %v944
    %981 = vmatprep.subr.mxu0 0.0
    %982 = vmatpush2.msra.mxu0 0.0
    %983 = vmatprep.subr.mxu0 0.0
    %984 = vmatpush2.msra.mxu0 0.0
    %985 = vmatprep.subr.mxu0 0.0
    %986 = vmatpush2.msra.mxu0 0.0
    %987 = vmatprep.subr.mxu0 0.0
    %988 = vmatpush2.msra.mxu0 0.0
    %989 = vmatprep.subr.mxu0 0.0
    %990 = vmatpush2.msra.mxu0 0.0
    %991 = vmatprep.subr.mxu0 0.0
    %992 = vmatpush2.msra.mxu0 0.0
    %993 = vmatprep.subr.mxu0 0.0
    %994 = vmatpush2.msra.mxu0 0.0
    %995 = vmatprep.subr.mxu0 0.0
    %996 = vmatpush2.msra.mxu0 0.0
    %997 = vmatprep.subr.mxu0 0.0
    %998 = vmatpush2.msra.mxu0 0.0
    %999 = vmatprep.subr.mxu0 0.0
    %1000 = vmatpush2.msra.mxu0 0.0
    %1001 = vmatprep.subr.mxu0 0.0
    %1002 = vmatpush2.msra.mxu0 0.0
    %1003 = vmatprep.subr.mxu0 0.0
    %1004 = vmatpush2.msra.mxu0 0.0
    %1005 = vmatprep.subr.mxu0 0.0
    %1006 = vmatpush2.msra.mxu0 0.0
    %1007 = vmatprep.subr.mxu0 0.0
    %1008 = vmatpush2.msra.mxu0 0.0
    %1009 = vmatprep.subr.mxu0 0.0
    %1010 = vmatpush2.msra.mxu0 0.0
    %1011 = vmatprep.subr.mxu0 0.0
    %1012 = vmatpush2.msra.mxu0 0.0
    %1013 = vmatprep.mubr.f32.mxu0 0.0
    %1014 = vmatmul.mubr.f32.gmra.mxu0 %v947
    %v1015 = vpop.f32.mrf.mxu0
    %v1016 = vadd.f32 0.0, %v1015
    %v1017 = vpop.f32.mrf.mxu0
    %1018 = vdwg.mxu0
    %1019 = vst.msk [vmem:[#allocation2 + $0x8] sm:$0xff] %vm179, %v1016
    %1020 = vrot.lane.b32.xlu0 %v173, 120
    %v1021 = vpop.permute.xlu0 %1020
    %1022 = vrot.lane.b32.xlu0 %v173, 88
    %v1023 = vpop.permute.xlu0 %1022
    %v1024 = vsel %vm179, %v1021, 0
    %v1026 = vsel %vm179, %v1023, 0
    %1028 = vmatprep.subr.mxu0 0.0
    %1029 = vmatpush1.xpose.msra.mxu0 0.0
    %1030 = vmatprep.subr.mxu0 0.0
    %1031 = vmatpush1.xpose.msra.mxu0 0.0
    %1032 = vmatprep.subr.mxu0 0.0
    %1033 = vmatpush1.xpose.msra.mxu0 0.0
    %1034 = vmatprep.subr.mxu0 0.0
    %1035 = vmatpush1.xpose.msra.mxu0 0.0
    %1036 = vmatprep.subr.mxu0 0.0
    %1037 = vmatpush1.xpose.msra.mxu0 0.0
    %1038 = vmatprep.subr.mxu0 0.0
    %1039 = vmatpush1.xpose.msra.mxu0 0.0
    %1040 = vmatprep.subr.mxu0 0.0
    %1041 = vmatpush1.xpose.msra.mxu0 0.0
    %1042 = vmatprep.subr.mxu0 0.0
    %1043 = vmatpush1.xpose.msra.mxu0 0.0
    %1044 = vmatprep.subr.mxu0 0.0
    %1045 = vmatpush1.xpose.msra.mxu0 0.0
    %1046 = vmatprep.subr.mxu0 0.0
    %1047 = vmatpush1.xpose.msra.mxu0 0.0
    %1048 = vmatprep.subr.mxu0 0.0
    %1049 = vmatpush1.xpose.msra.mxu0 0.0
    %1050 = vmatprep.subr.mxu0 0.0
    %1051 = vmatpush1.xpose.msra.mxu0 0.0
    %1052 = vmatprep.subr.mxu0 0.0
    %1053 = vmatpush1.xpose.msra.mxu0 0.0
    %1054 = vmatprep.subr.mxu0 0.0
    %1055 = vmatpush1.xpose.msra.mxu0 0.0
    %1056 = vmatprep.subr.mxu0 0.0
    %1057 = vmatpush1.xpose.msra.mxu0 0.0
    %1058 = vmatprep.subr.mxu0 0.0
    %1059 = vmatpush1.xpose.msra.mxu0 %v1026
    %1060 = vmatprep.subr.mxu0 0.0
    %1061 = vmatpush2.xpose.msra.mxu0 0.0
    %1062 = vmatprep.subr.mxu0 0.0
    %1063 = vmatpush2.xpose.msra.mxu0 0.0
    %1064 = vmatprep.subr.mxu0 0.0
    %1065 = vmatpush2.xpose.msra.mxu0 0.0
    %1066 = vmatprep.subr.mxu0 0.0
    %1067 = vmatpush2.xpose.msra.mxu0 0.0
    %1068 = vmatprep.subr.mxu0 0.0
    %1069 = vmatpush2.xpose.msra.mxu0 0.0
    %1070 = vmatprep.subr.mxu0 0.0
    %1071 = vmatpush2.xpose.msra.mxu0 0.0
    %1072 = vmatprep.subr.mxu0 0.0
    %1073 = vmatpush2.xpose.msra.mxu0 0.0
    %1074 = vmatprep.subr.mxu0 0.0
    %1075 = vmatpush2.xpose.msra.mxu0 0.0
    %1076 = vmatprep.subr.mxu0 0.0
    %1077 = vmatpush2.xpose.msra.mxu0 0.0
    %1078 = vmatprep.subr.mxu0 0.0
    %1079 = vmatpush2.xpose.msra.mxu0 0.0
    %1080 = vmatprep.subr.mxu0 0.0
    %1081 = vmatpush2.xpose.msra.mxu0 0.0
    %1082 = vmatprep.subr.mxu0 0.0
    %1083 = vmatpush2.xpose.msra.mxu0 0.0
    %1084 = vmatprep.subr.mxu0 0.0
    %1085 = vmatpush2.xpose.msra.mxu0 0.0
    %1086 = vmatprep.subr.mxu0 0.0
    %1087 = vmatpush2.xpose.msra.mxu0 0.0
    %1088 = vmatprep.subr.mxu0 0.0
    %1089 = vmatpush2.xpose.msra.mxu0 0.0
    %1090 = vmatprep.subr.mxu0 0.0
    %1091 = vmatpush2.xpose.msra.mxu0 0.0
    %1092 = vmatprep.mubr.f32.mxu0 0.0
    %1093 = vmatmul.mubr.f32.gmra.mxu0 %v1024
    %v1094 = vpop.f32.mrf.mxu0
    %v1095 = vadd.f32 0.0, %v1094
    %v1096 = vpop.f32.mrf.mxu0
    %1097 = vdwg.mxu0
    %v1098 = vsel %vm179, %v1095, -inf
    %1099 = vmax.xlane.f32.xlu0 %v1098
    %v1100 = vpop.xlane.xlu0 %1099
    %v1101 = vsub.f32 %v1095, %v1100
    %v1102 = vmul.f32 %v1101, 1.442695
    %v1103 = vpow.pop %v1102
    %v1104 = vsel %vm179, %v1103, 0.0
    %1105 = vadd.xlane.f32.xlu0 %v1104
    %v1106 = vpop.xlane.xlu0 %1105
    %v1107 = vrcp.pop %v1106
    %v1108 = vmul.f32 %v1103, %v1107
    %1109 = vrot.lane.b32.xlu0 %v173, 56
    %v1110 = vpop.permute.xlu0 %1109
    %v1113 = vsel %vm179, %v1108, 0
    %1115 = vmatprep.subr.mxu0 0.0
    %1116 = vmatpush1.msra.mxu0 0.0
    %1117 = vmatprep.subr.mxu0 0.0
    %1118 = vmatpush1.msra.mxu0 0.0
    %1119 = vmatprep.subr.mxu0 0.0
    %1120 = vmatpush1.msra.mxu0 0.0
    %1121 = vmatprep.subr.mxu0 0.0
    %1122 = vmatpush1.msra.mxu0 0.0
    %1123 = vmatprep.subr.mxu0 0.0
    %1124 = vmatpush1.msra.mxu0 0.0
    %1125 = vmatprep.subr.mxu0 0.0
    %1126 = vmatpush1.msra.mxu0 0.0
    %1127 = vmatprep.subr.mxu0 0.0
    %1128 = vmatpush1.msra.mxu0 0.0
    %1129 = vmatprep.subr.mxu0 0.0
    %1130 = vmatpush1.msra.mxu0 0.0
    %1131 = vmatprep.subr.mxu0 0.0
    %1132 = vmatpush1.msra.mxu0 0.0
    %1133 = vmatprep.subr.mxu0 0.0
    %1134 = vmatpush1.msra.mxu0 0.0
    %1135 = vmatprep.subr.mxu0 0.0
    %1136 = vmatpush1.msra.mxu0 0.0
    %1137 = vmatprep.subr.mxu0 0.0
    %1138 = vmatpush1.msra.mxu0 0.0
    %1139 = vmatprep.subr.mxu0 0.0
    %1140 = vmatpush1.msra.mxu0 0.0
    %1141 = vmatprep.subr.mxu0 0.0
    %1142 = vmatpush1.msra.mxu0 0.0
    %1143 = vmatprep.subr.mxu0 0.0
    %1144 = vmatpush1.msra.mxu0 0.0
    %1145 = vmatprep.subr.mxu0 0.0
    %1146 = vmatpush1.msra.mxu0 %v1110
    %1147 = vmatprep.subr.mxu0 0.0
    %1148 = vmatpush2.msra.mxu0 0.0
    %1149 = vmatprep.subr.mxu0 0.0
    %1150 = vmatpush2.msra.mxu0 0.0
    %1151 = vmatprep.subr.mxu0 0.0
    %1152 = vmatpush2.msra.mxu0 0.0
    %1153 = vmatprep.subr.mxu0 0.0
    %1154 = vmatpush2.msra.mxu0 0.0
    %1155 = vmatprep.subr.mxu0 0.0
    %1156 = vmatpush2.msra.mxu0 0.0
    %1157 = vmatprep.subr.mxu0 0.0
    %1158 = vmatpush2.msra.mxu0 0.0
    %1159 = vmatprep.subr.mxu0 0.0
    %1160 = vmatpush2.msra.mxu0 0.0
    %1161 = vmatprep.subr.mxu0 0.0
    %1162 = vmatpush2.msra.mxu0 0.0
    %1163 = vmatprep.subr.mxu0 0.0
    %1164 = vmatpush2.msra.mxu0 0.0
    %1165 = vmatprep.subr.mxu0 0.0
    %1166 = vmatpush2.msra.mxu0 0.0
    %1167 = vmatprep.subr.mxu0 0.0
    %1168 = vmatpush2.msra.mxu0 0.0
    %1169 = vmatprep.subr.mxu0 0.0
    %1170 = vmatpush2.msra.mxu0 0.0
    %1171 = vmatprep.subr.mxu0 0.0
    %1172 = vmatpush2.msra.mxu0 0.0
    %1173 = vmatprep.subr.mxu0 0.0
    %1174 = vmatpush2.msra.mxu0 0.0
    %1175 = vmatprep.subr.mxu0 0.0
    %1176 = vmatpush2.msra.mxu0 0.0
    %1177 = vmatprep.subr.mxu0 0.0
    %1178 = vmatpush2.msra.mxu0 0.0
    %1179 = vmatprep.mubr.f32.mxu0 0.0
    %1180 = vmatmul.mubr.f32.gmra.mxu0 %v1113
    %v1181 = vpop.f32.mrf.mxu0
    %v1182 = vadd.f32 0.0, %v1181
    %v1183 = vpop.f32.mrf.mxu0
    %1184 = vdwg.mxu0
    %1186 = vrot.lane.b32.xlu0 %v1182, 8
    %v1187 = vpop.permute.xlu0 %1186
    %1189 = vst.msk [vmem:[#allocation2 + $0x8] sm:$0xff] %vm511, %v1187
    %1190 = vrot.lane.b32.xlu0 %v173, 112
    %v1191 = vpop.permute.xlu0 %1190
    %1192 = vrot.lane.b32.xlu0 %v173, 80
    %v1193 = vpop.permute.xlu0 %1192
    %v1194 = vsel %vm179, %v1191, 0
    %v1196 = vsel %vm179, %v1193, 0
    %1198 = vmatprep.subr.mxu0 0.0
    %1199 = vmatpush1.xpose.msra.mxu0 0.0
    %1200 = vmatprep.subr.mxu0 0.0
    %1201 = vmatpush1.xpose.msra.mxu0 0.0
    %1202 = vmatprep.subr.mxu0 0.0
    %1203 = vmatpush1.xpose.msra.mxu0 0.0
    %1204 = vmatprep.subr.mxu0 0.0
    %1205 = vmatpush1.xpose.msra.mxu0 0.0
    %1206 = vmatprep.subr.mxu0 0.0
    %1207 = vmatpush1.xpose.msra.mxu0 0.0
    %1208 = vmatprep.subr.mxu0 0.0
    %1209 = vmatpush1.xpose.msra.mxu0 0.0
    %1210 = vmatprep.subr.mxu0 0.0
    %1211 = vmatpush1.xpose.msra.mxu0 0.0
    %1212 = vmatprep.subr.mxu0 0.0
    %1213 = vmatpush1.xpose.msra.mxu0 0.0
    %1214 = vmatprep.subr.mxu0 0.0
    %1215 = vmatpush1.xpose.msra.mxu0 0.0
    %1216 = vmatprep.subr.mxu0 0.0
    %1217 = vmatpush1.xpose.msra.mxu0 0.0
    %1218 = vmatprep.subr.mxu0 0.0
    %1219 = vmatpush1.xpose.msra.mxu0 0.0
    %1220 = vmatprep.subr.mxu0 0.0
    %1221 = vmatpush1.xpose.msra.mxu0 0.0
    %1222 = vmatprep.subr.mxu0 0.0
    %1223 = vmatpush1.xpose.msra.mxu0 0.0
    %1224 = vmatprep.subr.mxu0 0.0
    %1225 = vmatpush1.xpose.msra.mxu0 0.0
    %1226 = vmatprep.subr.mxu0 0.0
    %1227 = vmatpush1.xpose.msra.mxu0 0.0
    %1228 = vmatprep.subr.mxu0 0.0
    %1229 = vmatpush1.xpose.msra.mxu0 %v1196
    %1230 = vmatprep.subr.mxu0 0.0
    %1231 = vmatpush2.xpose.msra.mxu0 0.0
    %1232 = vmatprep.subr.mxu0 0.0
    %1233 = vmatpush2.xpose.msra.mxu0 0.0
    %1234 = vmatprep.subr.mxu0 0.0
    %1235 = vmatpush2.xpose.msra.mxu0 0.0
    %1236 = vmatprep.subr.mxu0 0.0
    %1237 = vmatpush2.xpose.msra.mxu0 0.0
    %1238 = vmatprep.subr.mxu0 0.0
    %1239 = vmatpush2.xpose.msra.mxu0 0.0
    %1240 = vmatprep.subr.mxu0 0.0
    %1241 = vmatpush2.xpose.msra.mxu0 0.0
    %1242 = vmatprep.subr.mxu0 0.0
    %1243 = vmatpush2.xpose.msra.mxu0 0.0
    %1244 = vmatprep.subr.mxu0 0.0
    %1245 = vmatpush2.xpose.msra.mxu0 0.0
    %1246 = vmatprep.subr.mxu0 0.0
    %1247 = vmatpush2.xpose.msra.mxu0 0.0
    %1248 = vmatprep.subr.mxu0 0.0
    %1249 = vmatpush2.xpose.msra.mxu0 0.0
    %1250 = vmatprep.subr.mxu0 0.0
    %1251 = vmatpush2.xpose.msra.mxu0 0.0
    %1252 = vmatprep.subr.mxu0 0.0
    %1253 = vmatpush2.xpose.msra.mxu0 0.0
    %1254 = vmatprep.subr.mxu0 0.0
    %1255 = vmatpush2.xpose.msra.mxu0 0.0
    %1256 = vmatprep.subr.mxu0 0.0
    %1257 = vmatpush2.xpose.msra.mxu0 0.0
    %1258 = vmatprep.subr.mxu0 0.0
    %1259 = vmatpush2.xpose.msra.mxu0 0.0
    %1260 = vmatprep.subr.mxu0 0.0
    %1261 = vmatpush2.xpose.msra.mxu0 0.0
    %1262 = vmatprep.mubr.f32.mxu0 0.0
    %1263 = vmatmul.mubr.f32.gmra.mxu0 %v1194
    %v1264 = vpop.f32.mrf.mxu0
    %v1265 = vadd.f32 0.0, %v1264
    %v1266 = vpop.f32.mrf.mxu0
    %1267 = vdwg.mxu0
    %v1268 = vsel %vm179, %v1265, -inf
    %1269 = vmax.xlane.f32.xlu0 %v1268
    %v1270 = vpop.xlane.xlu0 %1269
    %v1271 = vsub.f32 %v1265, %v1270
    %v1272 = vmul.f32 %v1271, 1.442695
    %v1273 = vpow.pop %v1272
    %v1274 = vsel %vm179, %v1273, 0.0
    %1275 = vadd.xlane.f32.xlu0 %v1274
    %v1276 = vpop.xlane.xlu0 %1275
    %v1277 = vrcp.pop %v1276
    %v1278 = vmul.f32 %v1273, %v1277
    %1279 = vrot.lane.b32.xlu0 %v173, 48
    %v1280 = vpop.permute.xlu0 %1279
    %v1283 = vsel %vm179, %v1278, 0
    %1285 = vmatprep.subr.mxu0 0.0
    %1286 = vmatpush1.msra.mxu0 0.0
    %1287 = vmatprep.subr.mxu0 0.0
    %1288 = vmatpush1.msra.mxu0 0.0
    %1289 = vmatprep.subr.mxu0 0.0
    %1290 = vmatpush1.msra.mxu0 0.0
    %1291 = vmatprep.subr.mxu0 0.0
    %1292 = vmatpush1.msra.mxu0 0.0
    %1293 = vmatprep.subr.mxu0 0.0
    %1294 = vmatpush1.msra.mxu0 0.0
    %1295 = vmatprep.subr.mxu0 0.0
    %1296 = vmatpush1.msra.mxu0 0.0
    %1297 = vmatprep.subr.mxu0 0.0
    %1298 = vmatpush1.msra.mxu0 0.0
    %1299 = vmatprep.subr.mxu0 0.0
    %1300 = vmatpush1.msra.mxu0 0.0
    %1301 = vmatprep.subr.mxu0 0.0
    %1302 = vmatpush1.msra.mxu0 0.0
    %1303 = vmatprep.subr.mxu0 0.0
    %1304 = vmatpush1.msra.mxu0 0.0
    %1305 = vmatprep.subr.mxu0 0.0
    %1306 = vmatpush1.msra.mxu0 0.0
    %1307 = vmatprep.subr.mxu0 0.0
    %1308 = vmatpush1.msra.mxu0 0.0
    %1309 = vmatprep.subr.mxu0 0.0
    %1310 = vmatpush1.msra.mxu0 0.0
    %1311 = vmatprep.subr.mxu0 0.0
    %1312 = vmatpush1.msra.mxu0 0.0
    %1313 = vmatprep.subr.mxu0 0.0
    %1314 = vmatpush1.msra.mxu0 0.0
    %1315 = vmatprep.subr.mxu0 0.0
    %1316 = vmatpush1.msra.mxu0 %v1280
    %1317 = vmatprep.subr.mxu0 0.0
    %1318 = vmatpush2.msra.mxu0 0.0
    %1319 = vmatprep.subr.mxu0 0.0
    %1320 = vmatpush2.msra.mxu0 0.0
    %1321 = vmatprep.subr.mxu0 0.0
    %1322 = vmatpush2.msra.mxu0 0.0
    %1323 = vmatprep.subr.mxu0 0.0
    %1324 = vmatpush2.msra.mxu0 0.0
    %1325 = vmatprep.subr.mxu0 0.0
    %1326 = vmatpush2.msra.mxu0 0.0
    %1327 = vmatprep.subr.mxu0 0.0
    %1328 = vmatpush2.msra.mxu0 0.0
    %1329 = vmatprep.subr.mxu0 0.0
    %1330 = vmatpush2.msra.mxu0 0.0
    %1331 = vmatprep.subr.mxu0 0.0
    %1332 = vmatpush2.msra.mxu0 0.0
    %1333 = vmatprep.subr.mxu0 0.0
    %1334 = vmatpush2.msra.mxu0 0.0
    %1335 = vmatprep.subr.mxu0 0.0
    %1336 = vmatpush2.msra.mxu0 0.0
    %1337 = vmatprep.subr.mxu0 0.0
    %1338 = vmatpush2.msra.mxu0 0.0
    %1339 = vmatprep.subr.mxu0 0.0
    %1340 = vmatpush2.msra.mxu0 0.0
    %1341 = vmatprep.subr.mxu0 0.0
    %1342 = vmatpush2.msra.mxu0 0.0
    %1343 = vmatprep.subr.mxu0 0.0
    %1344 = vmatpush2.msra.mxu0 0.0
    %1345 = vmatprep.subr.mxu0 0.0
    %1346 = vmatpush2.msra.mxu0 0.0
    %1347 = vmatprep.subr.mxu0 0.0
    %1348 = vmatpush2.msra.mxu0 0.0
    %1349 = vmatprep.mubr.f32.mxu0 0.0
    %1350 = vmatmul.mubr.f32.gmra.mxu0 %v1283
    %v1351 = vpop.f32.mrf.mxu0
    %v1352 = vadd.f32 0.0, %v1351
    %v1353 = vpop.f32.mrf.mxu0
    %1354 = vdwg.mxu0
    %1356 = vrot.lane.b32.xlu0 %v1352, 16
    %v1357 = vpop.permute.xlu0 %1356
    %1359 = vst.msk [vmem:[#allocation2 + $0x8] sm:$0xff] %vm682, %v1357
    %1360 = vrot.lane.b32.xlu0 %v173, 104
    %v1361 = vpop.permute.xlu0 %1360
    %1362 = vrot.lane.b32.xlu0 %v173, 72
    %v1363 = vpop.permute.xlu0 %1362
    %v1364 = vsel %vm179, %v1361, 0
    %v1366 = vsel %vm179, %v1363, 0
    %1368 = vmatprep.subr.mxu0 0.0
    %1369 = vmatpush1.xpose.msra.mxu0 0.0
    %1370 = vmatprep.subr.mxu0 0.0
    %1371 = vmatpush1.xpose.msra.mxu0 0.0
    %1372 = vmatprep.subr.mxu0 0.0
    %1373 = vmatpush1.xpose.msra.mxu0 0.0
    %1374 = vmatprep.subr.mxu0 0.0
    %1375 = vmatpush1.xpose.msra.mxu0 0.0
    %1376 = vmatprep.subr.mxu0 0.0
    %1377 = vmatpush1.xpose.msra.mxu0 0.0
    %1378 = vmatprep.subr.mxu0 0.0
    %1379 = vmatpush1.xpose.msra.mxu0 0.0
    %1380 = vmatprep.subr.mxu0 0.0
    %1381 = vmatpush1.xpose.msra.mxu0 0.0
    %1382 = vmatprep.subr.mxu0 0.0
    %1383 = vmatpush1.xpose.msra.mxu0 0.0
    %1384 = vmatprep.subr.mxu0 0.0
    %1385 = vmatpush1.xpose.msra.mxu0 0.0
    %1386 = vmatprep.subr.mxu0 0.0
    %1387 = vmatpush1.xpose.msra.mxu0 0.0
    %1388 = vmatprep.subr.mxu0 0.0
    %1389 = vmatpush1.xpose.msra.mxu0 0.0
    %1390 = vmatprep.subr.mxu0 0.0
    %1391 = vmatpush1.xpose.msra.mxu0 0.0
    %1392 = vmatprep.subr.mxu0 0.0
    %1393 = vmatpush1.xpose.msra.mxu0 0.0
    %1394 = vmatprep.subr.mxu0 0.0
    %1395 = vmatpush1.xpose.msra.mxu0 0.0
    %1396 = vmatprep.subr.mxu0 0.0
    %1397 = vmatpush1.xpose.msra.mxu0 0.0
    %1398 = vmatprep.subr.mxu0 0.0
    %1399 = vmatpush1.xpose.msra.mxu0 %v1366
    %1400 = vmatprep.subr.mxu0 0.0
    %1401 = vmatpush2.xpose.msra.mxu0 0.0
    %1402 = vmatprep.subr.mxu0 0.0
    %1403 = vmatpush2.xpose.msra.mxu0 0.0
    %1404 = vmatprep.subr.mxu0 0.0
    %1405 = vmatpush2.xpose.msra.mxu0 0.0
    %1406 = vmatprep.subr.mxu0 0.0
    %1407 = vmatpush2.xpose.msra.mxu0 0.0
    %1408 = vmatprep.subr.mxu0 0.0
    %1409 = vmatpush2.xpose.msra.mxu0 0.0
    %1410 = vmatprep.subr.mxu0 0.0
    %1411 = vmatpush2.xpose.msra.mxu0 0.0
    %1412 = vmatprep.subr.mxu0 0.0
    %1413 = vmatpush2.xpose.msra.mxu0 0.0
    %1414 = vmatprep.subr.mxu0 0.0
    %1415 = vmatpush2.xpose.msra.mxu0 0.0
    %1416 = vmatprep.subr.mxu0 0.0
    %1417 = vmatpush2.xpose.msra.mxu0 0.0
    %1418 = vmatprep.subr.mxu0 0.0
    %1419 = vmatpush2.xpose.msra.mxu0 0.0
    %1420 = vmatprep.subr.mxu0 0.0
    %1421 = vmatpush2.xpose.msra.mxu0 0.0
    %1422 = vmatprep.subr.mxu0 0.0
    %1423 = vmatpush2.xpose.msra.mxu0 0.0
    %1424 = vmatprep.subr.mxu0 0.0
    %1425 = vmatpush2.xpose.msra.mxu0 0.0
    %1426 = vmatprep.subr.mxu0 0.0
    %1427 = vmatpush2.xpose.msra.mxu0 0.0
    %1428 = vmatprep.subr.mxu0 0.0
    %1429 = vmatpush2.xpose.msra.mxu0 0.0
    %1430 = vmatprep.subr.mxu0 0.0
    %1431 = vmatpush2.xpose.msra.mxu0 0.0
    %1432 = vmatprep.mubr.f32.mxu0 0.0
    %1433 = vmatmul.mubr.f32.gmra.mxu0 %v1364
    %v1434 = vpop.f32.mrf.mxu0
    %v1435 = vadd.f32 0.0, %v1434
    %v1436 = vpop.f32.mrf.mxu0
    %1437 = vdwg.mxu0
    %v1438 = vsel %vm179, %v1435, -inf
    %1439 = vmax.xlane.f32.xlu0 %v1438
    %v1440 = vpop.xlane.xlu0 %1439
    %v1441 = vsub.f32 %v1435, %v1440
    %v1442 = vmul.f32 %v1441, 1.442695
    %v1443 = vpow.pop %v1442
    %v1444 = vsel %vm179, %v1443, 0.0
    %1445 = vadd.xlane.f32.xlu0 %v1444
    %v1446 = vpop.xlane.xlu0 %1445
    %v1447 = vrcp.pop %v1446
    %v1448 = vmul.f32 %v1443, %v1447
    %1449 = vrot.lane.b32.xlu0 %v173, 40
    %v1450 = vpop.permute.xlu0 %1449
    %v1453 = vsel %vm179, %v1448, 0
    %1455 = vmatprep.subr.mxu0 0.0
    %1456 = vmatpush1.msra.mxu0 0.0
    %1457 = vmatprep.subr.mxu0 0.0
    %1458 = vmatpush1.msra.mxu0 0.0
    %1459 = vmatprep.subr.mxu0 0.0
    %1460 = vmatpush1.msra.mxu0 0.0
    %1461 = vmatprep.subr.mxu0 0.0
    %1462 = vmatpush1.msra.mxu0 0.0
    %1463 = vmatprep.subr.mxu0 0.0
    %1464 = vmatpush1.msra.mxu0 0.0
    %1465 = vmatprep.subr.mxu0 0.0
    %1466 = vmatpush1.msra.mxu0 0.0
    %1467 = vmatprep.subr.mxu0 0.0
    %1468 = vmatpush1.msra.mxu0 0.0
    %1469 = vmatprep.subr.mxu0 0.0
    %1470 = vmatpush1.msra.mxu0 0.0
    %1471 = vmatprep.subr.mxu0 0.0
    %1472 = vmatpush1.msra.mxu0 0.0
    %1473 = vmatprep.subr.mxu0 0.0
    %1474 = vmatpush1.msra.mxu0 0.0
    %1475 = vmatprep.subr.mxu0 0.0
    %1476 = vmatpush1.msra.mxu0 0.0
    %1477 = vmatprep.subr.mxu0 0.0
    %1478 = vmatpush1.msra.mxu0 0.0
    %1479 = vmatprep.subr.mxu0 0.0
    %1480 = vmatpush1.msra.mxu0 0.0
    %1481 = vmatprep.subr.mxu0 0.0
    %1482 = vmatpush1.msra.mxu0 0.0
    %1483 = vmatprep.subr.mxu0 0.0
    %1484 = vmatpush1.msra.mxu0 0.0
    %1485 = vmatprep.subr.mxu0 0.0
    %1486 = vmatpush1.msra.mxu0 %v1450
    %1487 = vmatprep.subr.mxu0 0.0
    %1488 = vmatpush2.msra.mxu0 0.0
    %1489 = vmatprep.subr.mxu0 0.0
    %1490 = vmatpush2.msra.mxu0 0.0
    %1491 = vmatprep.subr.mxu0 0.0
    %1492 = vmatpush2.msra.mxu0 0.0
    %1493 = vmatprep.subr.mxu0 0.0
    %1494 = vmatpush2.msra.mxu0 0.0
    %1495 = vmatprep.subr.mxu0 0.0
    %1496 = vmatpush2.msra.mxu0 0.0
    %1497 = vmatprep.subr.mxu0 0.0
    %1498 = vmatpush2.msra.mxu0 0.0
    %1499 = vmatprep.subr.mxu0 0.0
    %1500 = vmatpush2.msra.mxu0 0.0
    %1501 = vmatprep.subr.mxu0 0.0
    %1502 = vmatpush2.msra.mxu0 0.0
    %1503 = vmatprep.subr.mxu0 0.0
    %1504 = vmatpush2.msra.mxu0 0.0
    %1505 = vmatprep.subr.mxu0 0.0
    %1506 = vmatpush2.msra.mxu0 0.0
    %1507 = vmatprep.subr.mxu0 0.0
    %1508 = vmatpush2.msra.mxu0 0.0
    %1509 = vmatprep.subr.mxu0 0.0
    %1510 = vmatpush2.msra.mxu0 0.0
    %1511 = vmatprep.subr.mxu0 0.0
    %1512 = vmatpush2.msra.mxu0 0.0
    %1513 = vmatprep.subr.mxu0 0.0
    %1514 = vmatpush2.msra.mxu0 0.0
    %1515 = vmatprep.subr.mxu0 0.0
    %1516 = vmatpush2.msra.mxu0 0.0
    %1517 = vmatprep.subr.mxu0 0.0
    %1518 = vmatpush2.msra.mxu0 0.0
    %1519 = vmatprep.mubr.f32.mxu0 0.0
    %1520 = vmatmul.mubr.f32.gmra.mxu0 %v1453
    %v1521 = vpop.f32.mrf.mxu0
    %v1522 = vadd.f32 0.0, %v1521
    %v1523 = vpop.f32.mrf.mxu0
    %1524 = vdwg.mxu0
    %1526 = vrot.lane.b32.xlu0 %v1522, 24
    %v1527 = vpop.permute.xlu0 %1526
    %1529 = vst.msk [vmem:[#allocation2 + $0x8] sm:$0xff] %vm853, %v1527
    %v1530 = vld [vmem:[#allocation2] sm:$0xff]
    %v1531 = vld [vmem:[#allocation2 + $0x8] sm:$0xff]
    %1536 = vrot.lane.b32.xlu0 %v87, 32
    %v1537 = vpop.permute.xlu0 %1536
    %1538 = vrot.lane.b32.xlu0 %v88, 32
    %v1539 = vpop.permute.xlu0 %1538
    %1540 = vrot.lane.b32.xlu0 %v89, 32
    %v1541 = vpop.permute.xlu0 %1540
    %1542 = vrot.lane.b32.xlu0 %v90, 32
    %v1543 = vpop.permute.xlu0 %1542
    %1549 = vrot.lane.b32.xlu0 %v94, 32
    %v1550 = vpop.permute.xlu0 %1549
    %v1553 = vsel %vm47, %v1530, 0
    %v1556 = vsel %vm47, %v1531, 0
    %1558 = vmatprep.subr.mxu0 0.0
    %1559 = vmatpush1.msra.mxu0 0.0
    %1560 = vmatprep.subr.mxu0 0.0
    %1561 = vmatpush1.msra.mxu0 0.0
    %1562 = vmatprep.subr.mxu0 0.0
    %1563 = vmatpush1.msra.mxu0 0.0
    %1564 = vmatprep.subr.mxu0 0.0
    %1565 = vmatpush1.msra.mxu0 0.0
    %1566 = vmatprep.subr.mxu0 0.0
    %1567 = vmatpush1.msra.mxu0 0.0
    %1568 = vmatprep.subr.mxu0 0.0
    %1569 = vmatpush1.msra.mxu0 0.0
    %1570 = vmatprep.subr.mxu0 0.0
    %1571 = vmatpush1.msra.mxu0 0.0
    %1572 = vmatprep.subr.mxu0 0.0
    %1573 = vmatpush1.msra.mxu0 0.0
    %1574 = vmatprep.subr.mxu0 0.0
    %1575 = vmatpush1.msra.mxu0 0.0
    %1576 = vmatprep.subr.mxu0 0.0
    %1577 = vmatpush1.msra.mxu0 0.0
    %1578 = vmatprep.subr.mxu0 0.0
    %1579 = vmatpush1.msra.mxu0 0.0
    %1580 = vmatprep.subr.mxu0 0.0
    %1581 = vmatpush1.msra.mxu0 0.0
    %1582 = vmatprep.subr.mxu0 0.0
    %1583 = vmatpush1.msra.mxu0 %v1543
    %1584 = vmatprep.subr.mxu0 0.0
    %1585 = vmatpush1.msra.mxu0 %v1541
    %1586 = vmatprep.subr.mxu0 0.0
    %1587 = vmatpush1.msra.mxu0 %v1539
    %1588 = vmatprep.subr.mxu0 0.0
    %1589 = vmatpush1.msra.mxu0 %v1537
    %1590 = vmatprep.subr.mxu0 0.0
    %1591 = vmatpush2.msra.mxu0 0.0
    %1592 = vmatprep.subr.mxu0 0.0
    %1593 = vmatpush2.msra.mxu0 0.0
    %1594 = vmatprep.subr.mxu0 0.0
    %1595 = vmatpush2.msra.mxu0 0.0
    %1596 = vmatprep.subr.mxu0 0.0
    %1597 = vmatpush2.msra.mxu0 0.0
    %1598 = vmatprep.subr.mxu0 0.0
    %1599 = vmatpush2.msra.mxu0 0.0
    %1600 = vmatprep.subr.mxu0 0.0
    %1601 = vmatpush2.msra.mxu0 0.0
    %1602 = vmatprep.subr.mxu0 0.0
    %1603 = vmatpush2.msra.mxu0 0.0
    %1604 = vmatprep.subr.mxu0 0.0
    %1605 = vmatpush2.msra.mxu0 0.0
    %1606 = vmatprep.subr.mxu0 0.0
    %1607 = vmatpush2.msra.mxu0 0.0
    %1608 = vmatprep.subr.mxu0 0.0
    %1609 = vmatpush2.msra.mxu0 0.0
    %1610 = vmatprep.subr.mxu0 0.0
    %1611 = vmatpush2.msra.mxu0 0.0
    %1612 = vmatprep.subr.mxu0 0.0
    %1613 = vmatpush2.msra.mxu0 0.0
    %1614 = vmatprep.subr.mxu0 0.0
    %1615 = vmatpush2.msra.mxu0 0.0
    %1616 = vmatprep.subr.mxu0 0.0
    %1617 = vmatpush2.msra.mxu0 0.0
    %1618 = vmatprep.subr.mxu0 0.0
    %1619 = vmatpush2.msra.mxu0 0.0
    %1620 = vmatprep.subr.mxu0 0.0
    %1621 = vmatpush2.msra.mxu0 0.0
    %1622 = vmatprep.mubr.f32.mxu0 0.0
    %1623 = vmatmul.mubr.f32.gmra.mxu0 %v1553
    %v1624 = vpop.f32.mrf.mxu0
    %v1625 = vadd.f32 %v1550, %v1624
    %v1626 = vpop.f32.mrf.mxu0
    %1627 = vmatprep.mubr.f32.mxu0 0.0
    %1628 = vmatmul.mubr.f32.gmra.mxu0 %v1556
    %v1629 = vpop.f32.mrf.mxu0
    %v1630 = vadd.f32 %v1550, %v1629
    %v1631 = vpop.f32.mrf.mxu0
    %1632 = vdwg.mxu0
    %1633 = vst.msk [vmem:[#allocation8] sm:$0xff] %vm47, %v1625
    %1634 = vst.msk [vmem:[#allocation8 + $0x8] sm:$0xff] %vm47, %v1630
    // Predicated region
    $region22: #{tpu_custom_call.1} parent=1 // pred_check
      _
    $region23: #{tpu_custom_call.1} parent=1 // pred_check_branch
      %1636 = sbr.rel (0) target = $region25
    $region24: #{tpu_custom_call.1} parent=1 // pred_region
      %s1638 = ssub.s32 256, 256
      %1639 = vsyncadd [#allocation5], %s1638
      %s1640 = sshll.u32 [#allocation8], 4
      %s1641 = int_to_ptr.vmem [resolvable:$true] %s1640
      %1646 = dma.vmem_to_hbm [thread:$0]  %s1641, 256, %s3, [#allocation5], 128, 128, 8
    $region25: #{tpu_custom_call.1} parent=1 // pred_fallthru
      _
    // Predicated region
    $region26: #{tpu_custom_call.1} parent=1 // pred_check
      _
    $region27: #{tpu_custom_call.1} parent=1 // pred_check_branch
      %1648 = sbr.rel (0) target = $region29
    $region28: #{tpu_custom_call.1} parent=1 // pred_region
      %1649 = dma.done [#allocation5], 256
    $region29: #{tpu_custom_call.1} parent=1 // pred_fallthru
      _
    %1650 = vsyncpa [#allocation4], 1
    %1651 = vsyncpa [#allocation7], 1
    %1652 = vsyncpa [#allocation5], 1

</llo_original>
